<compile_context>
chip_gen: v6e
topology: v6e:2x2x1
jax: 0.10.0
libtpu: 0.0.40
codegen_flags: <defaults>
</compile_context>

<pallas_src>
import functools

import jax
import jax.numpy as jnp
from jax.experimental import pallas as pl
from jax.experimental.pallas import tpu as pltpu

BN_EPS = 1e-5
LRELU_SLOPE = 0.2
MAX_TILE_M = 1024  # lanes per M-tile (multiple of 128); ~86% of HBM roofline per ref


def _pick_tile_m(m):
    return m if m <= MAX_TILE_M else MAX_TILE_M


def _pad_m(x, tile_m):
    """Zero-pad the M (lane) axis to a multiple of tile_m (padded cols are inert)."""
    pad = (-x.shape[1]) % tile_m
    if pad:
        x = jnp.pad(x, ((0, 0), (0, pad)))
    return x


def _vmem_params(*buffer_bytes):
    est = 2 * int(sum(buffer_bytes)) + (2 << 20)          # double-buffered + slack
    limit = min(64 << 20, max(32 << 20, est))              # safe on v5e/v6e/v7x
    return pltpu.CompilerParams(dimension_semantics=("parallel",),
                                vmem_limit_bytes=limit)


def _apply_act(y, act):
    if act == "leaky":
        return jnp.where(y >= 0, y, LRELU_SLOPE * y)
    if act == "sigmoid":
        return jax.nn.sigmoid(y)
    return y


# ---------------------------------------------------------------------------
# Pallas kernels
# ---------------------------------------------------------------------------
def _mm_act_kernel(w_ref, x_ref, o_ref, *, act):
    """o = act(W @ x) for one M-tile; W stays resident, x/o tiles stream (lane-dense M)."""
    y = jnp.dot(w_ref[...], x_ref[...], preferred_element_type=jnp.float32)
    o_ref[...] = _apply_act(y, act).astype(o_ref.dtype)


def _mm_stats_kernel(w_ref, x_ref, o_ref, sum_ref, ssq_ref):
    """o = W @ x per tile, plus PER-TILE per-channel sum / sum-of-squares partials.

    Partials are written per grid step (no resident accumulator), so the M grid axis
    is fully parallel; the tiny cross-tile reduction happens in XLA afterwards.
    """
    y = jnp.dot(w_ref[...], x_ref[...], preferred_element_type=jnp.float32)
    o_ref[...] = y.astype(o_ref.dtype)
    sum_ref[...] = jnp.sum(y, axis=1, keepdims=True)[None]        # (1, Cout, 1)
    ssq_ref[...] = jnp.sum(y * y, axis=1, keepdims=True)[None]    # (1, Cout, 1)


# ---------------------------------------------------------------------------
# Pallas wrappers (gridded over M)
# ---------------------------------------------------------------------------
def mm_act(w, x, act, out_dtype=jnp.bfloat16):
    """act(W @ x).  w: (Cout, K) bf16, x: (K, M) bf16 -> (Cout, M), lane-dense on M."""
    cout, k = w.shape
    m = x.shape[1]
    tile_m = _pick_tile_m(m)
    xp = _pad_m(x, tile_m)
    mp = xp.shape[1]
    nt = mp // tile_m
    out_bytes = cout * tile_m * jnp.dtype(out_dtype).itemsize
    cost = pl.CostEstimate(
        flops=2 * mp * cout * k,
        transcendentals=(mp * cout if act == "sigmoid" else 0),
        bytes_accessed=w.size * 2 + xp.size * 2 + cout * mp * jnp.dtype(out_dtype).itemsize,
    )
    y = pl.pallas_call(
        functools.partial(_mm_act_kernel, act=act),
        out_shape=jax.ShapeDtypeStruct((cout, mp), out_dtype),
        grid=(nt,),
        in_specs=[
            pl.BlockSpec((cout, k), lambda i: (0, 0)),       # weight resident
            pl.BlockSpec((k, tile_m), lambda i: (0, i)),     # patches streamed over M
        ],
        out_specs=pl.BlockSpec((cout, tile_m), lambda i: (0, i)),
        compiler_params=_vmem_params(cout * k * 2, k * tile_m * 2, out_bytes),
        cost_estimate=cost,
    )(w, xp)
    return y[:, :m] if mp != m else y


def mm_stats(w, x):
    """W @ x (bf16 out) plus per-channel sum / sumsq (training-mode BatchNorm stats)."""
    cout, k = w.shape
    m = x.shape[1]
    tile_m = _pick_tile_m(m)
    xp = _pad_m(x, tile_m)          # zero-padded columns contribute nothing to the sums
    mp = xp.shape[1]
    nt = mp // tile_m
    cost = pl.CostEstimate(
        flops=2 * mp * cout * k + 3 * mp * cout,
        transcendentals=0,
        bytes_accessed=w.size * 2 + xp.size * 2 + cout * mp * 2,
    )
    y, psum, pssq = pl.pallas_call(
        _mm_stats_kernel,
        out_shape=(
            jax.ShapeDtypeStruct((cout, mp), jnp.bfloat16),
            jax.ShapeDtypeStruct((nt, cout, 1), jnp.float32),
            jax.ShapeDtypeStruct((nt, cout, 1), jnp.float32),
        ),
        grid=(nt,),
        in_specs=[
            pl.BlockSpec((cout, k), lambda i: (0, 0)),
            pl.BlockSpec((k, tile_m), lambda i: (0, i)),
        ],
        out_specs=(
            pl.BlockSpec((cout, tile_m), lambda i: (0, i)),
            pl.BlockSpec((1, cout, 1), lambda i: (i, 0, 0)),   # per-tile partials
            pl.BlockSpec((1, cout, 1), lambda i: (i, 0, 0)),
        ),
        compiler_params=_vmem_params(cout * k * 2, k * tile_m * 2,
                                     cout * tile_m * 2, 2 * cout * 4),
        cost_estimate=cost,
    )(w, xp)
    s = psum.sum(axis=0)[:, 0]       # (Cout,) — tiny XLA reduction
    ss = pssq.sum(axis=0)[:, 0]
    if mp != m:
        y = y[:, :m]
    return y, s, ss


# ---------------------------------------------------------------------------
# Plain-JAX glue (fuses under jit): channel-major im2col, BN affine + LeakyReLU
# ---------------------------------------------------------------------------
def im2col_cm(x_cnhw, kh, kw, stride, pad):
    """x (C, N, H, W) bf16 -> patches (K = kh*kw*C, M = N*OH*OW) bf16, (i, j, c) K-order."""
    # TODO(synk): patch extraction still runs as XLA glue; an in-kernel gather over the
    # kh*kw taps would remove the patch-matrix HBM materialization.
    c, n, h, w = x_cnhw.shape
    if pad:
        x_cnhw = jnp.pad(x_cnhw, ((0, 0), (0, 0), (pad, pad), (pad, pad)))
    hp, wp = h + 2 * pad, w + 2 * pad
    oh = (hp - kh) // stride + 1
    ow = (wp - kw) // stride + 1
    slabs = []
    for i in range(kh):
        for j in range(kw):
            slabs.append(x_cnhw[:, :, i:i + stride * oh:stride, j:j + stride * ow:stride])
    p = jnp.stack(slabs, axis=0)                       # (kh*kw, C, N, OH, OW)
    return p.reshape(kh * kw * c, n * oh * ow), oh, ow


def _weight_matrix(w_oihw):
    """(Cout, Cin, kh, kw) -> (Cout, kh*kw*Cin) bf16, matching im2col K-order."""
    cout = w_oihw.shape[0]
    return jnp.transpose(w_oihw, (0, 2, 3, 1)).reshape(cout, -1).astype(jnp.bfloat16)


def _bn_lrelu(y_bf16, scale, shift):
    """Per-channel affine + LeakyReLU(0.2), computed in f32, stored bf16.

    Runs as XLA elementwise glue that fuses with the next layer's pad/slice im2col
    under jit (no standalone Pallas pass, no extra f32 HBM round trip of y).
    """
    y = y_bf16.astype(jnp.float32) * scale[:, None] + shift[:, None]
    y = jnp.where(y >= 0, y, LRELU_SLOPE * y)
    return y.astype(jnp.bfloat16)


# ---------------------------------------------------------------------------
# Layers
# ---------------------------------------------------------------------------
def conv_act_layer(x_cm, w_oihw, n, h, w, stride, pad, act, out_dtype=jnp.bfloat16):
    cin = w_oihw.shape[1]
    patches, oh, ow = im2col_cm(x_cm.reshape(cin, n, h, w), 4, 4, stride, pad)
    y = mm_act(_weight_matrix(w_oihw), patches, act, out_dtype)
    return y, oh, ow


def conv_bn_stats_layer(x_cm, w_oihw, gamma, beta, n, h, w, stride=2, pad=1):
    """Conv (no bias) with fused per-channel batch stats; returns y plus BN scale/shift."""
    cin = w_oihw.shape[1]
    patches, oh, ow = im2col_cm(x_cm.reshape(cin, n, h, w), 4, 4, stride, pad)
    y, s, ss = mm_stats(_weight_matrix(w_oihw), patches)
    m = n * oh * ow
    mean = s / m
    var = jnp.maximum(ss / m - mean * mean, 0.0)   # biased batch var, clamped >= 0
    scale = gamma * jax.lax.rsqrt(var + BN_EPS)
    shift = beta - mean * scale
    return y, scale, shift, oh, ow


# ---------------------------------------------------------------------------
# Full forward pass (jitted end-to-end)
# ---------------------------------------------------------------------------
@jax.jit
def discriminator_forward(x_nchw, params):
    n, nc, h, w = x_nchw.shape
    # single layout change at the model boundary: NCHW f32 -> channel-major bf16 (C, N*H*W)
    x_cm = jnp.transpose(x_nchw, (1, 0, 2, 3)).reshape(nc, n * h * w).astype(jnp.bfloat16)

    # conv1 (nc -> 2*ndf, k4 s2 p1) + LeakyReLU(0.2), fused in the matmul epilogue
    y1, h1, w1 = conv_act_layer(x_cm, params["w1"], n, h, w, 2, 1, "leaky")

    # conv2 + BN stats (fused) ; affine+LeakyReLU applied in conv3's input glue
    y2, sc2, sh2, h2, w2 = conv_bn_stats_layer(y1, params["w2"], params["g2"], params["b2"],
                                               n, h1, w1)
    y2a = _bn_lrelu(y2, sc2, sh2)

    # conv3 + BN stats (fused) ; affine+LeakyReLU applied in conv4's input glue
    y3, sc3, sh3, h3, w3 = conv_bn_stats_layer(y2a, params["w3"], params["g3"], params["b3"],
                                               n, h2, w2)
    y3a = _bn_lrelu(y3, sc3, sh3)

    # conv4 (k4 s1 p0) + Sigmoid fused; f32 output feeds the tiny pool/head directly
    y4, h4, w4 = conv_act_layer(y3a, params["w4"], n, h3, w3, 1, 0, "sigmoid",
                                out_dtype=jnp.float32)

    # AdaptiveAvgPool2d((1,1)) + flatten + Linear(16*ndf, 1) + Sigmoid — tiny, fused by XLA
    cout4 = params["w4"].shape[0]
    pooled = y4.reshape(cout4, n, h4, w4).mean(axis=(2, 3)).T      # (N, 16*ndf)
    logits = pooled @ params["wl"].T + params["bl"]                 # (N, 1)
    return jax.nn.sigmoid(logits).reshape(-1)                       # (N,)


def init_params(key, nc, ndf):
    ks = jax.random.split(key, 8)
    std = 0.02
    return {
        "w1": std * jax.random.normal(ks[0], (2 * ndf, nc, 4, 4), jnp.float32),
        "w2": std * jax.random.normal(ks[1], (4 * ndf, 2 * ndf, 4, 4), jnp.float32),
        "g2": 1.0 + std * jax.random.normal(ks[2], (4 * ndf,), jnp.float32),
        "b2": jnp.zeros((4 * ndf,), jnp.float32),
        "w3": std * jax.random.normal(ks[3], (8 * ndf, 4 * ndf, 4, 4), jnp.float32),
        "g3": 1.0 + std * jax.random.normal(ks[4], (8 * ndf,), jnp.float32),
        "b3": jnp.zeros((8 * ndf,), jnp.float32),
        "w4": std * jax.random.normal(ks[5], (16 * ndf, 8 * ndf, 4, 4), jnp.float32),
        # synthetic deterministic init for the Linear head (not PyTorch's default)
        "wl": std * jax.random.normal(ks[6], (1, 16 * ndf), jnp.float32),
        "bl": jnp.zeros((1,), jnp.float32),
    }


if __name__ == "__main__":
    nc, ndf = 3, 8
    batch, spatial = 2, 32  # 32 -> 16 -> 8 -> 4 -> 1 through the four convs

    key = jax.random.PRNGKey(0)
    k_x, k_p = jax.random.split(key)
    x = jax.random.normal(k_x, (batch, nc, spatial, spatial), jnp.float32)
    params = init_params(k_p, nc, ndf)

    out = discriminator_forward(x, params)
    out = jax.block_until_ready(out)

    assert out.shape == (batch,)
    assert bool(jnp.all(jnp.isfinite(out)))
    assert bool(jnp.all((out >= 0.0) & (out <= 1.0)))
    print("KERNEL_OK")
</pallas_src>

<mosaic_0001>
module attributes {stable_mosaic.version = 11 : i64} {
  func.func @_mm_act_kernel(%arg0: i32, %arg1: memref<16x48xbf16, #tpu.memory_space<vmem>>, %arg2: memref<48x512xbf16, #tpu.memory_space<vmem>>, %arg3: memref<16x512xbf16, #tpu.memory_space<vmem>>) attributes {dimension_semantics = [#tpu.dimension_semantics<parallel>], iteration_bounds = array<i64: 1>, scalar_prefetch = 0 : i64, scratch_operands = 0 : i64, tpu.core_type = #tpu.core_type<tc>, window_params = [{pipeline_mode = #tpu.pipeline_mode<synchronous>, transform_indices = @transform_0, window_bounds = array<i64: 16, 48>}, {transform_indices = @transform_1, window_bounds = array<i64: 48, 512>}, {transform_indices = @transform_2, window_bounds = array<i64: 16, 512>}]} {
    %c0 = arith.constant 0 : index
    %c0_0 = arith.constant 0 : index
    %0 = vector.load %arg1[%c0, %c0_0] : memref<16x48xbf16, #tpu.memory_space<vmem>>, vector<16x48xbf16>
    %c0_1 = arith.constant 0 : index
    %c0_2 = arith.constant 0 : index
    %1 = vector.load %arg2[%c0_1, %c0_2] : memref<48x512xbf16, #tpu.memory_space<vmem>>, vector<48x512xbf16>
    %cst = arith.constant dense<0.000000e+00> : vector<16x512xf32>
    %2 = tpu.matmul %0, %1, %cst {dimension_numbers = #tpu.dot_dimension_numbers<[1], [0], [0], [1], [0, 0, 1, 1], [], []>} : vector<16x48xbf16>, vector<48x512xbf16>, vector<16x512xf32> -> vector<16x512xf32>
    %cst_3 = arith.constant 0.000000e+00 : f32
    %3 = vector.broadcast %cst_3 : f32 to vector<16x512xf32>
    %4 = arith.cmpf oge, %2, %3 : vector<16x512xf32>
    %cst_4 = arith.constant 2.000000e-01 : f32
    %5 = vector.broadcast %cst_4 : f32 to vector<16x512xf32>
    %6 = arith.mulf %5, %2 : vector<16x512xf32>
    %7 = arith.select %4, %2, %6 : vector<16x512xi1>, vector<16x512xf32>
    %8 = arith.truncf %7 : vector<16x512xf32> to vector<16x512xbf16>
    %c0_5 = arith.constant 0 : index
    %c0_6 = arith.constant 0 : index
    %9 = vector.load %arg3[%c0_5, %c0_6] : memref<16x512xbf16, #tpu.memory_space<vmem>>, vector<16x512xbf16>
    tpu.vector_store %arg3[%c0_5, %c0_6], %8 {strides = array<i32>} : memref<16x512xbf16, #tpu.memory_space<vmem>>, vector<16x512xbf16>,
    return
  }
  func.func @transform_0(%arg0: i32) -> (i32, i32) {
    %c0_i32 = arith.constant 0 : i32
    %c0_i32_0 = arith.constant 0 : i32
    %c0_i32_1 = arith.constant 0 : i32
    return %c0_i32, %c0_i32_0 : i32, i32
  }
  func.func @transform_1(%arg0: i32) -> (i32, i32) {
    %c0_i32 = arith.constant 0 : i32
    %c0_i32_0 = arith.constant 0 : i32
    return %c0_i32, %arg0 : i32, i32
  }
  func.func @transform_2(%arg0: i32) -> (i32, i32) {
    %c0_i32 = arith.constant 0 : i32
    %c0_i32_0 = arith.constant 0 : i32
    return %c0_i32, %arg0 : i32, i32
  }
}

module attributes {stable_mosaic.version = 11 : i64} {
  func.func @_mm_stats_kernel(%arg0: i32, %arg1: memref<32x256xbf16, #tpu.memory_space<vmem>>, %arg2: memref<256x128xbf16, #tpu.memory_space<vmem>>, %arg3: memref<32x128xbf16, #tpu.memory_space<vmem>>, %arg4: memref<1x32x1xf32, #tpu.memory_space<vmem>>, %arg5: memref<1x32x1xf32, #tpu.memory_space<vmem>>) attributes {dimension_semantics = [#tpu.dimension_semantics<parallel>], iteration_bounds = array<i64: 1>, scalar_prefetch = 0 : i64, scratch_operands = 0 : i64, tpu.core_type = #tpu.core_type<tc>, window_params = [{pipeline_mode = #tpu.pipeline_mode<synchronous>, transform_indices = @transform_0, window_bounds = array<i64: 32, 256>}, {transform_indices = @transform_1, window_bounds = array<i64: 256, 128>}, {transform_indices = @transform_2, window_bounds = array<i64: 32, 128>}, {transform_indices = @transform_3, window_bounds = array<i64: 1, 32, 1>}, {transform_indices = @transform_4, window_bounds = array<i64: 1, 32, 1>}]} {
    %c0 = arith.constant 0 : index
    %c0_0 = arith.constant 0 : index
    %0 = vector.load %arg1[%c0, %c0_0] : memref<32x256xbf16, #tpu.memory_space<vmem>>, vector<32x256xbf16>
    %c0_1 = arith.constant 0 : index
    %c0_2 = arith.constant 0 : index
    %1 = vector.load %arg2[%c0_1, %c0_2] : memref<256x128xbf16, #tpu.memory_space<vmem>>, vector<256x128xbf16>
    %cst = arith.constant dense<0.000000e+00> : vector<32x128xf32>
    %2 = tpu.matmul %0, %1, %cst {dimension_numbers = #tpu.dot_dimension_numbers<[1], [0], [0], [1], [0, 0, 1, 1], [], []>} : vector<32x256xbf16>, vector<256x128xbf16>, vector<32x128xf32> -> vector<32x128xf32>
    %3 = arith.truncf %2 : vector<32x128xf32> to vector<32x128xbf16>
    %c0_3 = arith.constant 0 : index
    %c0_4 = arith.constant 0 : index
    %4 = vector.load %arg3[%c0_3, %c0_4] : memref<32x128xbf16, #tpu.memory_space<vmem>>, vector<32x128xbf16>
    tpu.vector_store %arg3[%c0_3, %c0_4], %3 {strides = array<i32>} : memref<32x128xbf16, #tpu.memory_space<vmem>>, vector<32x128xbf16>,
    %cst_5 = arith.constant dense<0.000000e+00> : vector<32xf32>
    %5 = vector.multi_reduction <add>, %2, %cst_5 [1] : vector<32x128xf32> to vector<32xf32>
    %6 = vector.shape_cast %5 : vector<32xf32> to vector<32x1xf32>
    %7 = vector.shape_cast %6 : vector<32x1xf32> to vector<1x32x1xf32>
    %c0_6 = arith.constant 0 : index
    %c0_7 = arith.constant 0 : index
    %c0_8 = arith.constant 0 : index
    %8 = vector.load %arg4[%c0_6, %c0_7, %c0_8] : memref<1x32x1xf32, #tpu.memory_space<vmem>>, vector<1x32x1xf32>
    tpu.vector_store %arg4[%c0_6, %c0_7, %c0_8], %7 {strides = array<i32>} : memref<1x32x1xf32, #tpu.memory_space<vmem>>, vector<1x32x1xf32>,
    %9 = arith.mulf %2, %2 : vector<32x128xf32>
    %cst_9 = arith.constant dense<0.000000e+00> : vector<32xf32>
    %10 = vector.multi_reduction <add>, %9, %cst_9 [1] : vector<32x128xf32> to vector<32xf32>
    %11 = vector.shape_cast %10 : vector<32xf32> to vector<32x1xf32>
    %12 = vector.shape_cast %11 : vector<32x1xf32> to vector<1x32x1xf32>
    %c0_10 = arith.constant 0 : index
    %c0_11 = arith.constant 0 : index
    %c0_12 = arith.constant 0 : index
    %13 = vector.load %arg5[%c0_10, %c0_11, %c0_12] : memref<1x32x1xf32, #tpu.memory_space<vmem>>, vector<1x32x1xf32>
    tpu.vector_store %arg5[%c0_10, %c0_11, %c0_12], %12 {strides = array<i32>} : memref<1x32x1xf32, #tpu.memory_space<vmem>>, vector<1x32x1xf32>,
    return
  }
  func.func @transform_0(%arg0: i32) -> (i32, i32) {
    %c0_i32 = arith.constant 0 : i32
    %c0_i32_0 = arith.constant 0 : i32
    %c0_i32_1 = arith.constant 0 : i32
    return %c0_i32, %c0_i32_0 : i32, i32
  }
  func.func @transform_1(%arg0: i32) -> (i32, i32) {
    %c0_i32 = arith.constant 0 : i32
    %c0_i32_0 = arith.constant 0 : i32
    return %c0_i32, %arg0 : i32, i32
  }
  func.func @transform_2(%arg0: i32) -> (i32, i32) {
    %c0_i32 = arith.constant 0 : i32
    %c0_i32_0 = arith.constant 0 : i32
    return %c0_i32, %arg0 : i32, i32
  }
  func.func @transform_3(%arg0: i32) -> (i32, i32, i32) {
    %c0_i32 = arith.constant 0 : i32
    %c0_i32_0 = arith.constant 0 : i32
    %c0_i32_1 = arith.constant 0 : i32
    return %arg0, %c0_i32, %c0_i32_0 : i32, i32, i32
  }
  func.func @transform_4(%arg0: i32) -> (i32, i32, i32) {
    %c0_i32 = arith.constant 0 : i32
    %c0_i32_0 = arith.constant 0 : i32
    %c0_i32_1 = arith.constant 0 : i32
    return %arg0, %c0_i32, %c0_i32_0 : i32, i32, i32
  }
}

module attributes {stable_mosaic.version = 11 : i64} {
  func.func @_mm_stats_kernel(%arg0: i32, %arg1: memref<64x512xbf16, #tpu.memory_space<vmem>>, %arg2: memref<512x32xbf16, #tpu.memory_space<vmem>>, %arg3: memref<64x32xbf16, #tpu.memory_space<vmem>>, %arg4: memref<1x64x1xf32, #tpu.memory_space<vmem>>, %arg5: memref<1x64x1xf32, #tpu.memory_space<vmem>>) attributes {dimension_semantics = [#tpu.dimension_semantics<parallel>], iteration_bounds = array<i64: 1>, scalar_prefetch = 0 : i64, scratch_operands = 0 : i64, tpu.core_type = #tpu.core_type<tc>, window_params = [{pipeline_mode = #tpu.pipeline_mode<synchronous>, transform_indices = @transform_0, window_bounds = array<i64: 64, 512>}, {transform_indices = @transform_1, window_bounds = array<i64: 512, 32>}, {transform_indices = @transform_2, window_bounds = array<i64: 64, 32>}, {transform_indices = @transform_3, window_bounds = array<i64: 1, 64, 1>}, {transform_indices = @transform_4, window_bounds = array<i64: 1, 64, 1>}]} {
    %c0 = arith.constant 0 : index
    %c0_0 = arith.constant 0 : index
    %0 = vector.load %arg1[%c0, %c0_0] : memref<64x512xbf16, #tpu.memory_space<vmem>>, vector<64x512xbf16>
    %c0_1 = arith.constant 0 : index
    %c0_2 = arith.constant 0 : index
    %1 = vector.load %arg2[%c0_1, %c0_2] : memref<512x32xbf16, #tpu.memory_space<vmem>>, vector<512x32xbf16>
    %cst = arith.constant dense<0.000000e+00> : vector<64x32xf32>
    %2 = tpu.matmul %0, %1, %cst {dimension_numbers = #tpu.dot_dimension_numbers<[1], [0], [0], [1], [0, 0, 1, 1], [], []>} : vector<64x512xbf16>, vector<512x32xbf16>, vector<64x32xf32> -> vector<64x32xf32>
    %3 = arith.truncf %2 : vector<64x32xf32> to vector<64x32xbf16>
    %c0_3 = arith.constant 0 : index
    %c0_4 = arith.constant 0 : index
    %4 = vector.load %arg3[%c0_3, %c0_4] : memref<64x32xbf16, #tpu.memory_space<vmem>>, vector<64x32xbf16>
    tpu.vector_store %arg3[%c0_3, %c0_4], %3 {strides = array<i32>} : memref<64x32xbf16, #tpu.memory_space<vmem>>, vector<64x32xbf16>,
    %cst_5 = arith.constant dense<0.000000e+00> : vector<64xf32>
    %5 = vector.multi_reduction <add>, %2, %cst_5 [1] : vector<64x32xf32> to vector<64xf32>
    %6 = vector.shape_cast %5 : vector<64xf32> to vector<64x1xf32>
    %7 = vector.shape_cast %6 : vector<64x1xf32> to vector<1x64x1xf32>
    %c0_6 = arith.constant 0 : index
    %c0_7 = arith.constant 0 : index
    %c0_8 = arith.constant 0 : index
    %8 = vector.load %arg4[%c0_6, %c0_7, %c0_8] : memref<1x64x1xf32, #tpu.memory_space<vmem>>, vector<1x64x1xf32>
    tpu.vector_store %arg4[%c0_6, %c0_7, %c0_8], %7 {strides = array<i32>} : memref<1x64x1xf32, #tpu.memory_space<vmem>>, vector<1x64x1xf32>,
    %9 = arith.mulf %2, %2 : vector<64x32xf32>
    %cst_9 = arith.constant dense<0.000000e+00> : vector<64xf32>
    %10 = vector.multi_reduction <add>, %9, %cst_9 [1] : vector<64x32xf32> to vector<64xf32>
    %11 = vector.shape_cast %10 : vector<64xf32> to vector<64x1xf32>
    %12 = vector.shape_cast %11 : vector<64x1xf32> to vector<1x64x1xf32>
    %c0_10 = arith.constant 0 : index
    %c0_11 = arith.constant 0 : index
    %c0_12 = arith.constant 0 : index
    %13 = vector.load %arg5[%c0_10, %c0_11, %c0_12] : memref<1x64x1xf32, #tpu.memory_space<vmem>>, vector<1x64x1xf32>
    tpu.vector_store %arg5[%c0_10, %c0_11, %c0_12], %12 {strides = array<i32>} : memref<1x64x1xf32, #tpu.memory_space<vmem>>, vector<1x64x1xf32>,
    return
  }
  func.func @transform_0(%arg0: i32) -> (i32, i32) {
    %c0_i32 = arith.constant 0 : i32
    %c0_i32_0 = arith.constant 0 : i32
    %c0_i32_1 = arith.constant 0 : i32
    return %c0_i32, %c0_i32_0 : i32, i32
  }
  func.func @transform_1(%arg0: i32) -> (i32, i32) {
    %c0_i32 = arith.constant 0 : i32
    %c0_i32_0 = arith.constant 0 : i32
    return %c0_i32, %arg0 : i32, i32
  }
  func.func @transform_2(%arg0: i32) -> (i32, i32) {
    %c0_i32 = arith.constant 0 : i32
    %c0_i32_0 = arith.constant 0 : i32
    return %c0_i32, %arg0 : i32, i32
  }
  func.func @transform_3(%arg0: i32) -> (i32, i32, i32) {
    %c0_i32 = arith.constant 0 : i32
    %c0_i32_0 = arith.constant 0 : i32
    %c0_i32_1 = arith.constant 0 : i32
    return %arg0, %c0_i32, %c0_i32_0 : i32, i32, i32
  }
  func.func @transform_4(%arg0: i32) -> (i32, i32, i32) {
    %c0_i32 = arith.constant 0 : i32
    %c0_i32_0 = arith.constant 0 : i32
    %c0_i32_1 = arith.constant 0 : i32
    return %arg0, %c0_i32, %c0_i32_0 : i32, i32, i32
  }
}

module attributes {stable_mosaic.version = 11 : i64} {
  func.func @_mm_act_kernel(%arg0: i32, %arg1: memref<128x1024xbf16, #tpu.memory_space<vmem>>, %arg2: memref<1024x2xbf16, #tpu.memory_space<vmem>>, %arg3: memref<128x2xf32, #tpu.memory_space<vmem>>) attributes {dimension_semantics = [#tpu.dimension_semantics<parallel>], iteration_bounds = array<i64: 1>, scalar_prefetch = 0 : i64, scratch_operands = 0 : i64, tpu.core_type = #tpu.core_type<tc>, window_params = [{pipeline_mode = #tpu.pipeline_mode<synchronous>, transform_indices = @transform_0, window_bounds = array<i64: 128, 1024>}, {transform_indices = @transform_1, window_bounds = array<i64: 1024, 2>}, {transform_indices = @transform_2, window_bounds = array<i64: 128, 2>}]} {
    %c0 = arith.constant 0 : index
    %c0_0 = arith.constant 0 : index
    %0 = vector.load %arg1[%c0, %c0_0] : memref<128x1024xbf16, #tpu.memory_space<vmem>>, vector<128x1024xbf16>
    %c0_1 = arith.constant 0 : index
    %c0_2 = arith.constant 0 : index
    %1 = vector.load %arg2[%c0_1, %c0_2] : memref<1024x2xbf16, #tpu.memory_space<vmem>>, vector<1024x2xbf16>
    %cst = arith.constant dense<0.000000e+00> : vector<128x2xf32>
    %2 = tpu.matmul %0, %1, %cst {dimension_numbers = #tpu.dot_dimension_numbers<[1], [0], [0], [1], [0, 0, 1, 1], [], []>} : vector<128x1024xbf16>, vector<1024x2xbf16>, vector<128x2xf32> -> vector<128x2xf32>
    %3 = arith.negf %2 : vector<128x2xf32>
    %4 = math.exp %3 : vector<128x2xf32>
    %cst_3 = arith.constant 1.000000e+00 : f32
    %5 = vector.broadcast %cst_3 : f32 to vector<128x2xf32>
    %6 = arith.addf %5, %4 : vector<128x2xf32>
    %7 = arith.divf %5, %6 : vector<128x2xf32>
    %c0_4 = arith.constant 0 : index
    %c0_5 = arith.constant 0 : index
    %8 = vector.load %arg3[%c0_4, %c0_5] : memref<128x2xf32, #tpu.memory_space<vmem>>, vector<128x2xf32>
    tpu.vector_store %arg3[%c0_4, %c0_5], %7 {strides = array<i32>} : memref<128x2xf32, #tpu.memory_space<vmem>>, vector<128x2xf32>,
    return
  }
  func.func @transform_0(%arg0: i32) -> (i32, i32) {
    %c0_i32 = arith.constant 0 : i32
    %c0_i32_0 = arith.constant 0 : i32
    %c0_i32_1 = arith.constant 0 : i32
    return %c0_i32, %c0_i32_0 : i32, i32
  }
  func.func @transform_1(%arg0: i32) -> (i32, i32) {
    %c0_i32 = arith.constant 0 : i32
    %c0_i32_0 = arith.constant 0 : i32
    return %c0_i32, %arg0 : i32, i32
  }
  func.func @transform_2(%arg0: i32) -> (i32, i32) {
    %c0_i32 = arith.constant 0 : i32
    %c0_i32_0 = arith.constant 0 : i32
    return %c0_i32, %arg0 : i32, i32
  }
}

</mosaic_0001>

<llo_original>
// kernel: discriminator_forward.4
$region0: #{discriminator_forward.4}
  #allocation0 [shape = 'u32[]', space=smem, size = 0x4, offset = 0x4, fixed_abs, tag = 'smem constant byte address 0x4 - core index']
  #allocation1 [shape = 'u32[144,128]{1,0:T(1,128)}', space=vmem, size = 0x12000, scoped, tag = 'internal scratch']
  %s0 = inlined_call_operand.vmem [shape: bf16[16,48], index: 0, kind: input, shape index: {}]
  %s1 = inlined_call_operand.vmem [shape: bf16[48,512], index: 1, kind: input, shape index: {}]
  %s2 = inlined_call_operand.vmem [shape: bf16[16,512], index: 2, kind: output, shape index: {}]
  %s3 = sld [smem:[#allocation0]]
  $region18: #{discriminator_forward.4} parent=0
    _
  %s5 = ssub.s32 1, %s3
  %s6 = scalar_select 0, %s5, %s3
  // Predicated region
  $region2: #{discriminator_forward.4} parent=0 // pred_check
    _
  $region3: #{discriminator_forward.4} parent=0 // pred_check_branch
    %8 = sbr.rel (0) target = $region5
  $region4: #{discriminator_forward.4} parent=0 // pred_region
    _
  $region5: #{discriminator_forward.4} parent=0 // pred_fallthru
    _
  // Predicated region
  $region6: #{discriminator_forward.4} parent=0 // pred_check
    _
  $region7: #{discriminator_forward.4} parent=0 // pred_check_branch
    %10 = sbr.rel (0) target = $region9
  $region8: #{discriminator_forward.4} parent=0 // pred_region
    _
  $region9: #{discriminator_forward.4} parent=0 // pred_fallthru
    _
  %v12 = vld [vmem:[%s0] sm:$0xf]
  %v13 = vld [vmem:[%s0 + $0x4] sm:$0xf]
  %v14 = vld [vmem:[%s1] sm:$0xff]
  %v15 = vld [vmem:[%s1 + $0x8] sm:$0xff]
  %v16 = vld [vmem:[%s1 + $0x10] sm:$0xff]
  %v17 = vld [vmem:[%s1 + $0x18] sm:$0xff]
  %v18 = vld [vmem:[%s1 + $0x20] sm:$0xff]
  %v19 = vld [vmem:[%s1 + $0x28] sm:$0xff]
  %v20 = vld [vmem:[%s1 + $0x30] sm:$0xff]
  %v21 = vld [vmem:[%s1 + $0x38] sm:$0xff]
  %v22 = vld [vmem:[%s1 + $0x40] sm:$0xff]
  %v23 = vld [vmem:[%s1 + $0x48] sm:$0xff]
  %v24 = vld [vmem:[%s1 + $0x50] sm:$0xff]
  %v25 = vld [vmem:[%s1 + $0x58] sm:$0xff]
  %v28 = vunpack.c.l.b16 %v12
  %v29 = vunpack.c.l.b16 %v13
  %v30 = vpack.c.b16 %v29, %v28
  %v43 = vunpack.c.l.b16 %v14
  %v44 = vunpack.c.h.b16 %v14
  %v45 = vunpack.c.l.b16 %v15
  %v46 = vunpack.c.h.b16 %v15
  %v47 = vunpack.c.l.b16 %v16
  %v48 = vunpack.c.h.b16 %v16
  %v49 = vunpack.c.l.b16 %v17
  %v50 = vunpack.c.h.b16 %v17
  %v51 = vunpack.c.l.b16 %v18
  %v52 = vunpack.c.h.b16 %v18
  %v53 = vunpack.c.l.b16 %v19
  %v54 = vunpack.c.h.b16 %v19
  %v55 = vunpack.c.l.b16 %v20
  %v56 = vunpack.c.h.b16 %v20
  %v57 = vunpack.c.l.b16 %v21
  %v58 = vunpack.c.h.b16 %v21
  %v59 = vunpack.c.l.b16 %v22
  %v60 = vunpack.c.h.b16 %v22
  %v61 = vunpack.c.l.b16 %v23
  %v62 = vunpack.c.h.b16 %v23
  %v63 = vunpack.c.l.b16 %v24
  %v64 = vunpack.c.h.b16 %v24
  %v65 = vunpack.c.l.b16 %v25
  %v66 = vunpack.c.h.b16 %v25
  %v67 = vpack.c.b16 %v47, %v43
  %v68 = vpack.c.b16 %v48, %v44
  %v69 = vpack.c.b16 %v49, %v45
  %v70 = vpack.c.b16 %v50, %v46
  %v71 = vpack.c.b16 %v55, %v51
  %v72 = vpack.c.b16 %v56, %v52
  %v73 = vpack.c.b16 %v57, %v53
  %v74 = vpack.c.b16 %v58, %v54
  %v75 = vpack.c.b16 %v63, %v59
  %v76 = vpack.c.b16 %v64, %v60
  %v77 = vpack.c.b16 %v65, %v61
  %v78 = vpack.c.b16 %v66, %v62
  %vm91 = vcmask 392192
  %v93 = vsel %vm91, %v30, 0
  %95 = vmatprep.subr.bf16.mxu0 0
  %96 = vmatpush1.bf16.msra.mxu0 0
  %97 = vmatprep.subr.bf16.mxu0 0
  %98 = vmatpush1.bf16.msra.mxu0 0
  %99 = vmatprep.subr.bf16.mxu0 0
  %100 = vmatpush1.bf16.msra.mxu0 0
  %101 = vmatprep.subr.bf16.mxu0 0
  %102 = vmatpush1.bf16.msra.mxu0 0
  %103 = vmatprep.subr.bf16.mxu0 0
  %104 = vmatpush1.bf16.msra.mxu0 0
  %105 = vmatprep.subr.bf16.mxu0 %v76
  %106 = vmatpush1.bf16.msra.mxu0 %v75
  %107 = vmatprep.subr.bf16.mxu0 %v72
  %108 = vmatpush1.bf16.msra.mxu0 %v71
  %109 = vmatprep.subr.bf16.mxu0 %v68
  %110 = vmatpush1.bf16.msra.mxu0 %v67
  %111 = vmatprep.subr.bf16.mxu0 0
  %112 = vmatpush2.bf16.msra.mxu0 0
  %113 = vmatprep.subr.bf16.mxu0 0
  %114 = vmatpush2.bf16.msra.mxu0 0
  %115 = vmatprep.subr.bf16.mxu0 0
  %116 = vmatpush2.bf16.msra.mxu0 0
  %117 = vmatprep.subr.bf16.mxu0 0
  %118 = vmatpush2.bf16.msra.mxu0 0
  %119 = vmatprep.subr.bf16.mxu0 0
  %120 = vmatpush2.bf16.msra.mxu0 0
  %121 = vmatprep.subr.bf16.mxu0 0
  %122 = vmatpush2.bf16.msra.mxu0 0
  %123 = vmatprep.subr.bf16.mxu0 0
  %124 = vmatpush2.bf16.msra.mxu0 0
  %125 = vmatprep.subr.bf16.mxu0 0
  %126 = vmatpush2.bf16.msra.mxu0 0
  %127 = vmatprep.mubr.bf16.mxu0 0
  %128 = vmatmul.mubr.bf16.gmra.mxu0 %v93
  %v129 = vpop.f32.mrf.mxu0
  %v130 = vadd.f32 0.0, %v129
  %v131 = vpop.f32.mrf.mxu0
  %v132 = vadd.f32 0.0, %v131
  %v133 = vpop.f32.mrf.mxu0
  %v134 = vadd.f32 0.0, %v133
  %v135 = vpop.f32.mrf.mxu0
  %v136 = vadd.f32 0.0, %v135
  %137 = vdwg.mxu0
  %138 = vmatprep.subr.bf16.mxu0 0
  %139 = vmatpush1.bf16.msra.mxu0 0
  %140 = vmatprep.subr.bf16.mxu0 0
  %141 = vmatpush1.bf16.msra.mxu0 0
  %142 = vmatprep.subr.bf16.mxu0 0
  %143 = vmatpush1.bf16.msra.mxu0 0
  %144 = vmatprep.subr.bf16.mxu0 0
  %145 = vmatpush1.bf16.msra.mxu0 0
  %146 = vmatprep.subr.bf16.mxu0 0
  %147 = vmatpush1.bf16.msra.mxu0 0
  %148 = vmatprep.subr.bf16.mxu0 %v78
  %149 = vmatpush1.bf16.msra.mxu0 %v77
  %150 = vmatprep.subr.bf16.mxu0 %v74
  %151 = vmatpush1.bf16.msra.mxu0 %v73
  %152 = vmatprep.subr.bf16.mxu0 %v70
  %153 = vmatpush1.bf16.msra.mxu0 %v69
  %154 = vmatprep.subr.bf16.mxu0 0
  %155 = vmatpush2.bf16.msra.mxu0 0
  %156 = vmatprep.subr.bf16.mxu0 0
  %157 = vmatpush2.bf16.msra.mxu0 0
  %158 = vmatprep.subr.bf16.mxu0 0
  %159 = vmatpush2.bf16.msra.mxu0 0
  %160 = vmatprep.subr.bf16.mxu0 0
  %161 = vmatpush2.bf16.msra.mxu0 0
  %162 = vmatprep.subr.bf16.mxu0 0
  %163 = vmatpush2.bf16.msra.mxu0 0
  %164 = vmatprep.subr.bf16.mxu0 0
  %165 = vmatpush2.bf16.msra.mxu0 0
  %166 = vmatprep.subr.bf16.mxu0 0
  %167 = vmatpush2.bf16.msra.mxu0 0
  %168 = vmatprep.subr.bf16.mxu0 0
  %169 = vmatpush2.bf16.msra.mxu0 0
  %170 = vmatprep.mubr.bf16.mxu0 0
  %171 = vmatmul.mubr.bf16.gmra.mxu0 %v93
  %v172 = vpop.f32.mrf.mxu0
  %v173 = vadd.f32 0.0, %v172
  %v174 = vpop.f32.mrf.mxu0
  %v175 = vadd.f32 0.0, %v174
  %v176 = vpop.f32.mrf.mxu0
  %v177 = vadd.f32 0.0, %v176
  %v178 = vpop.f32.mrf.mxu0
  %v179 = vadd.f32 0.0, %v178
  %180 = vdwg.mxu0
  %vm181 = vcmp.ge.f32.partialorder %v130, 0.0
  %vm182 = vcmp.ge.f32.partialorder %v132, 0.0
  %vm183 = vcmp.ge.f32.partialorder %v173, 0.0
  %vm184 = vcmp.ge.f32.partialorder %v175, 0.0
  %vm185 = vcmp.ge.f32.partialorder %v134, 0.0
  %vm186 = vcmp.ge.f32.partialorder %v136, 0.0
  %vm187 = vcmp.ge.f32.partialorder %v177, 0.0
  %vm188 = vcmp.ge.f32.partialorder %v179, 0.0
  %v189 = vmul.f32 %v130, 0.2
  %v190 = vmul.f32 %v132, 0.2
  %v191 = vmul.f32 %v173, 0.2
  %v192 = vmul.f32 %v175, 0.2
  %v193 = vmul.f32 %v134, 0.2
  %v194 = vmul.f32 %v136, 0.2
  %v195 = vmul.f32 %v177, 0.2
  %v196 = vmul.f32 %v179, 0.2
  %v197 = vsel %vm181, %v130, %v189
  %v198 = vsel %vm182, %v132, %v190
  %v199 = vsel %vm183, %v173, %v191
  %v200 = vsel %vm184, %v175, %v192
  %v201 = vsel %vm185, %v134, %v193
  %v202 = vsel %vm186, %v136, %v194
  %v203 = vsel %vm187, %v177, %v195
  %v204 = vsel %vm188, %v179, %v196
  %v205 = vpack.c.bf16 %v201, %v197
  %v206 = vpack.c.bf16 %v202, %v198
  %v207 = vpack.c.bf16 %v203, %v199
  %v208 = vpack.c.bf16 %v204, %v200
  %v213 = vunpack.c.l.b16 %v205
  %v214 = vunpack.c.l.b16 %v206
  %v215 = vunpack.c.l.b16 %v207
  %v216 = vunpack.c.l.b16 %v208
  %v217 = vunpack.c.h.b16 %v205
  %v218 = vunpack.c.h.b16 %v206
  %v219 = vunpack.c.h.b16 %v207
  %v220 = vunpack.c.h.b16 %v208
  %v221 = vpack.c.b16 %v214, %v213
  %v222 = vpack.c.b16 %v216, %v215
  %v223 = vpack.c.b16 %v218, %v217
  %v224 = vpack.c.b16 %v220, %v219
  %229 = vst [vmem:[%s2] sm:$0xff] %v221
  %230 = vst [vmem:[%s2 + $0x8] sm:$0xff] %v222
  %231 = vst [vmem:[%s2 + $0x10] sm:$0xff] %v223
  %232 = vst [vmem:[%s2 + $0x18] sm:$0xff] %v224
  // Predicated region
  $region10: #{discriminator_forward.4} parent=0 // pred_check
    _
  $region11: #{discriminator_forward.4} parent=0 // pred_check_branch
    %234 = sbr.rel (0) target = $region13
  $region12: #{discriminator_forward.4} parent=0 // pred_region
    _
  $region13: #{discriminator_forward.4} parent=0 // pred_fallthru
    _
  // Predicated region
  $region14: #{discriminator_forward.4} parent=0 // pred_check
    _
  $region15: #{discriminator_forward.4} parent=0 // pred_check_branch
    %236 = sbr.rel (0) target = $region17
  $region16: #{discriminator_forward.4} parent=0 // pred_region
    _
  $region17: #{discriminator_forward.4} parent=0 // pred_fallthru
    _

// kernel: discriminator_forward.5
$region0: #{discriminator_forward.5}
  #allocation0 [shape = 'u32[]', space=smem, size = 0x4, offset = 0x4, fixed_abs, tag = 'smem constant byte address 0x4 - core index']
  #allocation1 [shape = 'u32[144,128]{1,0:T(1,128)}', space=vmem, size = 0x12000, scoped, tag = 'internal scratch']
  %s0 = inlined_call_operand.vmem [shape: bf16[32,256], index: 0, kind: input, shape index: {}]
  %s1 = inlined_call_operand.vmem [shape: bf16[256,128], index: 1, kind: input, shape index: {}]
  %s2 = inlined_call_operand.vmem [shape: bf16[32,128], index: 2, kind: output, shape index: {0}]
  %s3 = inlined_call_operand.vmem [shape: f32[1,32,1], index: 3, kind: output, shape index: {1}]
  %s4 = inlined_call_operand.vmem [shape: f32[1,32,1], index: 4, kind: output, shape index: {2}]
  %5 = xla_tuple %s2, %s3, %s4
  %s6 = sld [smem:[#allocation0]]
  $region34: #{discriminator_forward.5} parent=0
    _
  %s8 = ssub.s32 1, %s6
  %s9 = scalar_select 0, %s8, %s6
  // Predicated region
  $region2: #{discriminator_forward.5} parent=0 // pred_check
    _
  $region3: #{discriminator_forward.5} parent=0 // pred_check_branch
    %11 = sbr.rel (0) target = $region5
  $region4: #{discriminator_forward.5} parent=0 // pred_region
    _
  $region5: #{discriminator_forward.5} parent=0 // pred_fallthru
    _
  // Predicated region
  $region6: #{discriminator_forward.5} parent=0 // pred_check
    _
  $region7: #{discriminator_forward.5} parent=0 // pred_check_branch
    %13 = sbr.rel (0) target = $region9
  $region8: #{discriminator_forward.5} parent=0 // pred_region
    _
  $region9: #{discriminator_forward.5} parent=0 // pred_fallthru
    _
  %v15 = vld [vmem:[%s0] sm:$0xff]
  %v16 = vld [vmem:[%s0 + $0x8] sm:$0xff]
  %v17 = vld [vmem:[%s0 + $0x10] sm:$0xff]
  %v18 = vld [vmem:[%s0 + $0x18] sm:$0xff]
  %v19 = vld [vmem:[%s1] sm:$0xf]
  %v20 = vld [vmem:[%s1 + $0x4] sm:$0xf]
  %v21 = vld [vmem:[%s1 + $0x8] sm:$0xf]
  %v22 = vld [vmem:[%s1 + $0xc] sm:$0xf]
  %v23 = vld [vmem:[%s1 + $0x10] sm:$0xf]
  %v24 = vld [vmem:[%s1 + $0x14] sm:$0xf]
  %v25 = vld [vmem:[%s1 + $0x18] sm:$0xf]
  %v26 = vld [vmem:[%s1 + $0x1c] sm:$0xf]
  %v27 = vld [vmem:[%s1 + $0x20] sm:$0xf]
  %v28 = vld [vmem:[%s1 + $0x24] sm:$0xf]
  %v29 = vld [vmem:[%s1 + $0x28] sm:$0xf]
  %v30 = vld [vmem:[%s1 + $0x2c] sm:$0xf]
  %v31 = vld [vmem:[%s1 + $0x30] sm:$0xf]
  %v32 = vld [vmem:[%s1 + $0x34] sm:$0xf]
  %v33 = vld [vmem:[%s1 + $0x38] sm:$0xf]
  %v34 = vld [vmem:[%s1 + $0x3c] sm:$0xf]
  %v35 = vld [vmem:[%s1 + $0x40] sm:$0xf]
  %v36 = vld [vmem:[%s1 + $0x44] sm:$0xf]
  %v37 = vld [vmem:[%s1 + $0x48] sm:$0xf]
  %v38 = vld [vmem:[%s1 + $0x4c] sm:$0xf]
  %v39 = vld [vmem:[%s1 + $0x50] sm:$0xf]
  %v40 = vld [vmem:[%s1 + $0x54] sm:$0xf]
  %v41 = vld [vmem:[%s1 + $0x58] sm:$0xf]
  %v42 = vld [vmem:[%s1 + $0x5c] sm:$0xf]
  %v43 = vld [vmem:[%s1 + $0x60] sm:$0xf]
  %v44 = vld [vmem:[%s1 + $0x64] sm:$0xf]
  %v45 = vld [vmem:[%s1 + $0x68] sm:$0xf]
  %v46 = vld [vmem:[%s1 + $0x6c] sm:$0xf]
  %v47 = vld [vmem:[%s1 + $0x70] sm:$0xf]
  %v48 = vld [vmem:[%s1 + $0x74] sm:$0xf]
  %v49 = vld [vmem:[%s1 + $0x78] sm:$0xf]
  %v50 = vld [vmem:[%s1 + $0x7c] sm:$0xf]
  %v55 = vunpack.c.l.b16 %v15
  %v56 = vunpack.c.h.b16 %v15
  %v57 = vunpack.c.l.b16 %v16
  %v58 = vunpack.c.h.b16 %v16
  %v59 = vunpack.c.l.b16 %v17
  %v60 = vunpack.c.h.b16 %v17
  %v61 = vunpack.c.l.b16 %v18
  %v62 = vunpack.c.h.b16 %v18
  %v63 = vpack.c.b16 %v57, %v55
  %v64 = vpack.c.b16 %v58, %v56
  %v65 = vpack.c.b16 %v61, %v59
  %v66 = vpack.c.b16 %v62, %v60
  %v103 = vunpack.c.l.b16 %v19
  %v104 = vunpack.c.l.b16 %v20
  %v105 = vunpack.c.l.b16 %v21
  %v106 = vunpack.c.l.b16 %v22
  %v107 = vunpack.c.l.b16 %v23
  %v108 = vunpack.c.l.b16 %v24
  %v109 = vunpack.c.l.b16 %v25
  %v110 = vunpack.c.l.b16 %v26
  %v111 = vunpack.c.l.b16 %v27
  %v112 = vunpack.c.l.b16 %v28
  %v113 = vunpack.c.l.b16 %v29
  %v114 = vunpack.c.l.b16 %v30
  %v115 = vunpack.c.l.b16 %v31
  %v116 = vunpack.c.l.b16 %v32
  %v117 = vunpack.c.l.b16 %v33
  %v118 = vunpack.c.l.b16 %v34
  %v119 = vunpack.c.l.b16 %v35
  %v120 = vunpack.c.l.b16 %v36
  %v121 = vunpack.c.l.b16 %v37
  %v122 = vunpack.c.l.b16 %v38
  %v123 = vunpack.c.l.b16 %v39
  %v124 = vunpack.c.l.b16 %v40
  %v125 = vunpack.c.l.b16 %v41
  %v126 = vunpack.c.l.b16 %v42
  %v127 = vunpack.c.l.b16 %v43
  %v128 = vunpack.c.l.b16 %v44
  %v129 = vunpack.c.l.b16 %v45
  %v130 = vunpack.c.l.b16 %v46
  %v131 = vunpack.c.l.b16 %v47
  %v132 = vunpack.c.l.b16 %v48
  %v133 = vunpack.c.l.b16 %v49
  %v134 = vunpack.c.l.b16 %v50
  %v135 = vpack.c.b16 %v104, %v103
  %v136 = vpack.c.b16 %v106, %v105
  %v137 = vpack.c.b16 %v108, %v107
  %v138 = vpack.c.b16 %v110, %v109
  %v139 = vpack.c.b16 %v112, %v111
  %v140 = vpack.c.b16 %v114, %v113
  %v141 = vpack.c.b16 %v116, %v115
  %v142 = vpack.c.b16 %v118, %v117
  %v143 = vpack.c.b16 %v120, %v119
  %v144 = vpack.c.b16 %v122, %v121
  %v145 = vpack.c.b16 %v124, %v123
  %v146 = vpack.c.b16 %v126, %v125
  %v147 = vpack.c.b16 %v128, %v127
  %v148 = vpack.c.b16 %v130, %v129
  %v149 = vpack.c.b16 %v132, %v131
  %v150 = vpack.c.b16 %v134, %v133
  %167 = vmatprep.subr.bf16.mxu0 0
  %168 = vmatpush1.bf16.msra.mxu0 %v142
  %169 = vmatprep.subr.bf16.mxu0 0
  %170 = vmatpush1.bf16.msra.mxu0 %v141
  %171 = vmatprep.subr.bf16.mxu0 0
  %172 = vmatpush1.bf16.msra.mxu0 %v140
  %173 = vmatprep.subr.bf16.mxu0 0
  %174 = vmatpush1.bf16.msra.mxu0 %v139
  %175 = vmatprep.subr.bf16.mxu0 0
  %176 = vmatpush1.bf16.msra.mxu0 %v138
  %177 = vmatprep.subr.bf16.mxu0 0
  %178 = vmatpush1.bf16.msra.mxu0 %v137
  %179 = vmatprep.subr.bf16.mxu0 0
  %180 = vmatpush1.bf16.msra.mxu0 %v136
  %181 = vmatprep.subr.bf16.mxu0 0
  %182 = vmatpush1.bf16.msra.mxu0 %v135
  %183 = vmatprep.subr.bf16.mxu0 0
  %184 = vmatpush2.bf16.msra.mxu0 %v150
  %185 = vmatprep.subr.bf16.mxu0 0
  %186 = vmatpush2.bf16.msra.mxu0 %v149
  %187 = vmatprep.subr.bf16.mxu0 0
  %188 = vmatpush2.bf16.msra.mxu0 %v148
  %189 = vmatprep.subr.bf16.mxu0 0
  %190 = vmatpush2.bf16.msra.mxu0 %v147
  %191 = vmatprep.subr.bf16.mxu0 0
  %192 = vmatpush2.bf16.msra.mxu0 %v146
  %193 = vmatprep.subr.bf16.mxu0 0
  %194 = vmatpush2.bf16.msra.mxu0 %v145
  %195 = vmatprep.subr.bf16.mxu0 0
  %196 = vmatpush2.bf16.msra.mxu0 %v144
  %197 = vmatprep.subr.bf16.mxu0 0
  %198 = vmatpush2.bf16.msra.mxu0 %v143
  %199 = vmatprep.mubr.bf16.mxu0 %v64
  %200 = vmatmul.mubr.bf16.gmra.mxu0 %v63
  %v201 = vpop.f32.mrf.mxu0
  %v202 = vadd.f32 0.0, %v201
  %v203 = vpop.f32.mrf.mxu0
  %v204 = vpop.f32.mrf.mxu0
  %v205 = vadd.f32 0.0, %v204
  %v206 = vpop.f32.mrf.mxu0
  %207 = vmatprep.mubr.bf16.mxu0 %v66
  %208 = vmatmul.mubr.bf16.gmra.mxu0 %v65
  %v209 = vpop.f32.mrf.mxu0
  %v210 = vadd.f32 0.0, %v209
  %v211 = vpop.f32.mrf.mxu0
  %v212 = vpop.f32.mrf.mxu0
  %v213 = vadd.f32 0.0, %v212
  %v214 = vpop.f32.mrf.mxu0
  %215 = vdwg.mxu0
  %v216 = vpack.c.bf16 %v205, %v202
  %v217 = vpack.c.bf16 %v213, %v210
  %v220 = vunpack.c.l.b16 %v216
  %v221 = vunpack.c.h.b16 %v216
  %v222 = vunpack.c.l.b16 %v217
  %v223 = vunpack.c.h.b16 %v217
  %v224 = vpack.c.b16 %v220, %v220
  %v225 = vpack.c.b16 %v221, %v221
  %v226 = vpack.c.b16 %v222, %v222
  %v227 = vpack.c.b16 %v223, %v223
  %232 = vst [vmem:[%s2] sm:$0xf] %v224
  %233 = vst [vmem:[%s2 + $0x4] sm:$0xf] %v225
  %234 = vst [vmem:[%s2 + $0x8] sm:$0xf] %v226
  %235 = vst [vmem:[%s2 + $0xc] sm:$0xf] %v227
  %236 = vadd.xlane.f32.xlu0 %v202
  %v237 = vpop.xlane.xlu0 %236
  %238 = vadd.xlane.f32.xlu0 %v205
  %v239 = vpop.xlane.xlu0 %238
  %240 = vadd.xlane.f32.xlu0 %v210
  %v241 = vpop.xlane.xlu0 %240
  %242 = vadd.xlane.f32.xlu0 %v213
  %v243 = vpop.xlane.xlu0 %242
  %vm244 = vcmask 7168
  %245 = vst.msk [vmem:[%s3] sm:$0xff] %vm244, %v237
  %246 = vst.msk [vmem:[%s3 + $0x8] sm:$0xff] %vm244, %v239
  %247 = vst.msk [vmem:[%s3 + $0x10] sm:$0xff] %vm244, %v241
  %248 = vst.msk [vmem:[%s3 + $0x18] sm:$0xff] %vm244, %v243
  %v249 = vmul.f32 %v202, %v202
  %v250 = vmul.f32 %v205, %v205
  %v251 = vmul.f32 %v210, %v210
  %v252 = vmul.f32 %v213, %v213
  %253 = vadd.xlane.f32.xlu0 %v249
  %v254 = vpop.xlane.xlu0 %253
  %255 = vadd.xlane.f32.xlu0 %v250
  %v256 = vpop.xlane.xlu0 %255
  %257 = vadd.xlane.f32.xlu0 %v251
  %v258 = vpop.xlane.xlu0 %257
  %259 = vadd.xlane.f32.xlu0 %v252
  %v260 = vpop.xlane.xlu0 %259
  %261 = vst.msk [vmem:[%s4] sm:$0xff] %vm244, %v254
  %262 = vst.msk [vmem:[%s4 + $0x8] sm:$0xff] %vm244, %v256
  %263 = vst.msk [vmem:[%s4 + $0x10] sm:$0xff] %vm244, %v258
  %264 = vst.msk [vmem:[%s4 + $0x18] sm:$0xff] %vm244, %v260
  // Predicated region
  $region10: #{discriminator_forward.5} parent=0 // pred_check
    _
  $region11: #{discriminator_forward.5} parent=0 // pred_check_branch
    %266 = sbr.rel (0) target = $region13
  $region12: #{discriminator_forward.5} parent=0 // pred_region
    _
  $region13: #{discriminator_forward.5} parent=0 // pred_fallthru
    _
  // Predicated region
  $region14: #{discriminator_forward.5} parent=0 // pred_check
    _
  $region15: #{discriminator_forward.5} parent=0 // pred_check_branch
    %268 = sbr.rel (0) target = $region17
  $region16: #{discriminator_forward.5} parent=0 // pred_region
    _
  $region17: #{discriminator_forward.5} parent=0 // pred_fallthru
    _
  // Predicated region
  $region18: #{discriminator_forward.5} parent=0 // pred_check
    _
  $region19: #{discriminator_forward.5} parent=0 // pred_check_branch
    %270 = sbr.rel (0) target = $region21
  $region20: #{discriminator_forward.5} parent=0 // pred_region
    _
  $region21: #{discriminator_forward.5} parent=0 // pred_fallthru
    _
  // Predicated region
  $region22: #{discriminator_forward.5} parent=0 // pred_check
    _
  $region23: #{discriminator_forward.5} parent=0 // pred_check_branch
    %272 = sbr.rel (0) target = $region25
  $region24: #{discriminator_forward.5} parent=0 // pred_region
    _
  $region25: #{discriminator_forward.5} parent=0 // pred_fallthru
    _
  // Predicated region
  $region26: #{discriminator_forward.5} parent=0 // pred_check
    _
  $region27: #{discriminator_forward.5} parent=0 // pred_check_branch
    %274 = sbr.rel (0) target = $region29
  $region28: #{discriminator_forward.5} parent=0 // pred_region
    _
  $region29: #{discriminator_forward.5} parent=0 // pred_fallthru
    _
  // Predicated region
  $region30: #{discriminator_forward.5} parent=0 // pred_check
    _
  $region31: #{discriminator_forward.5} parent=0 // pred_check_branch
    %276 = sbr.rel (0) target = $region33
  $region32: #{discriminator_forward.5} parent=0 // pred_region
    _
  $region33: #{discriminator_forward.5} parent=0 // pred_fallthru
    _

// kernel: discriminator_forward.6
$region0: #{discriminator_forward.6}
  #allocation0 [shape = 'u32[]', space=smem, size = 0x4, offset = 0x4, fixed_abs, tag = 'smem constant byte address 0x4 - core index']
  #allocation1 [shape = 'u32[144,128]{1,0:T(1,128)}', space=vmem, size = 0x12000, scoped, tag = 'internal scratch']
  %s0 = inlined_call_operand.vmem [shape: bf16[64,512], index: 0, kind: input, shape index: {}]
  %s1 = inlined_call_operand.vmem [shape: bf16[512,32], index: 1, kind: input, shape index: {}]
  %s2 = inlined_call_operand.vmem [shape: bf16[64,32], index: 2, kind: output, shape index: {0}]
  %s3 = inlined_call_operand.vmem [shape: f32[1,64,1], index: 3, kind: output, shape index: {1}]
  %s4 = inlined_call_operand.vmem [shape: f32[1,64,1], index: 4, kind: output, shape index: {2}]
  %5 = xla_tuple %s2, %s3, %s4
  %s6 = sld [smem:[#allocation0]]
  $region34: #{discriminator_forward.6} parent=0
    _
  %s8 = ssub.s32 1, %s6
  %s9 = scalar_select 0, %s8, %s6
  // Predicated region
  $region2: #{discriminator_forward.6} parent=0 // pred_check
    _
  $region3: #{discriminator_forward.6} parent=0 // pred_check_branch
    %11 = sbr.rel (0) target = $region5
  $region4: #{discriminator_forward.6} parent=0 // pred_region
    _
  $region5: #{discriminator_forward.6} parent=0 // pred_fallthru
    _
  // Predicated region
  $region6: #{discriminator_forward.6} parent=0 // pred_check
    _
  $region7: #{discriminator_forward.6} parent=0 // pred_check_branch
    %13 = sbr.rel (0) target = $region9
  $region8: #{discriminator_forward.6} parent=0 // pred_region
    _
  $region9: #{discriminator_forward.6} parent=0 // pred_fallthru
    _
  %v15 = vld [vmem:[%s0] sm:$0xff]
  %v16 = vld [vmem:[%s0 + $0x8] sm:$0xff]
  %v17 = vld [vmem:[%s0 + $0x10] sm:$0xff]
  %v18 = vld [vmem:[%s0 + $0x18] sm:$0xff]
  %v19 = vld [vmem:[%s0 + $0x20] sm:$0xff]
  %v20 = vld [vmem:[%s0 + $0x28] sm:$0xff]
  %v21 = vld [vmem:[%s0 + $0x30] sm:$0xff]
  %v22 = vld [vmem:[%s0 + $0x38] sm:$0xff]
  %v23 = vld [vmem:[%s0 + $0x40] sm:$0xff]
  %v24 = vld [vmem:[%s0 + $0x48] sm:$0xff]
  %v25 = vld [vmem:[%s0 + $0x50] sm:$0xff]
  %v26 = vld [vmem:[%s0 + $0x58] sm:$0xff]
  %v27 = vld [vmem:[%s0 + $0x60] sm:$0xff]
  %v28 = vld [vmem:[%s0 + $0x68] sm:$0xff]
  %v29 = vld [vmem:[%s0 + $0x70] sm:$0xff]
  %v30 = vld [vmem:[%s0 + $0x78] sm:$0xff]
  %v31 = vld [vmem:[%s1] sm:$0xf]
  %v32 = vld [vmem:[%s1 + $0x4] sm:$0xf]
  %v33 = vld [vmem:[%s1 + $0x8] sm:$0xf]
  %v34 = vld [vmem:[%s1 + $0xc] sm:$0xf]
  %v35 = vld [vmem:[%s1 + $0x10] sm:$0xf]
  %v36 = vld [vmem:[%s1 + $0x14] sm:$0xf]
  %v37 = vld [vmem:[%s1 + $0x18] sm:$0xf]
  %v38 = vld [vmem:[%s1 + $0x1c] sm:$0xf]
  %v39 = vld [vmem:[%s1 + $0x20] sm:$0xf]
  %v40 = vld [vmem:[%s1 + $0x24] sm:$0xf]
  %v41 = vld [vmem:[%s1 + $0x28] sm:$0xf]
  %v42 = vld [vmem:[%s1 + $0x2c] sm:$0xf]
  %v43 = vld [vmem:[%s1 + $0x30] sm:$0xf]
  %v44 = vld [vmem:[%s1 + $0x34] sm:$0xf]
  %v45 = vld [vmem:[%s1 + $0x38] sm:$0xf]
  %v46 = vld [vmem:[%s1 + $0x3c] sm:$0xf]
  %v47 = vld [vmem:[%s1 + $0x40] sm:$0xf]
  %v48 = vld [vmem:[%s1 + $0x44] sm:$0xf]
  %v49 = vld [vmem:[%s1 + $0x48] sm:$0xf]
  %v50 = vld [vmem:[%s1 + $0x4c] sm:$0xf]
  %v51 = vld [vmem:[%s1 + $0x50] sm:$0xf]
  %v52 = vld [vmem:[%s1 + $0x54] sm:$0xf]
  %v53 = vld [vmem:[%s1 + $0x58] sm:$0xf]
  %v54 = vld [vmem:[%s1 + $0x5c] sm:$0xf]
  %v55 = vld [vmem:[%s1 + $0x60] sm:$0xf]
  %v56 = vld [vmem:[%s1 + $0x64] sm:$0xf]
  %v57 = vld [vmem:[%s1 + $0x68] sm:$0xf]
  %v58 = vld [vmem:[%s1 + $0x6c] sm:$0xf]
  %v59 = vld [vmem:[%s1 + $0x70] sm:$0xf]
  %v60 = vld [vmem:[%s1 + $0x74] sm:$0xf]
  %v61 = vld [vmem:[%s1 + $0x78] sm:$0xf]
  %v62 = vld [vmem:[%s1 + $0x7c] sm:$0xf]
  %v63 = vld [vmem:[%s1 + $0x80] sm:$0xf]
  %v64 = vld [vmem:[%s1 + $0x84] sm:$0xf]
  %v65 = vld [vmem:[%s1 + $0x88] sm:$0xf]
  %v66 = vld [vmem:[%s1 + $0x8c] sm:$0xf]
  %v67 = vld [vmem:[%s1 + $0x90] sm:$0xf]
  %v68 = vld [vmem:[%s1 + $0x94] sm:$0xf]
  %v69 = vld [vmem:[%s1 + $0x98] sm:$0xf]
  %v70 = vld [vmem:[%s1 + $0x9c] sm:$0xf]
  %v71 = vld [vmem:[%s1 + $0xa0] sm:$0xf]
  %v72 = vld [vmem:[%s1 + $0xa4] sm:$0xf]
  %v73 = vld [vmem:[%s1 + $0xa8] sm:$0xf]
  %v74 = vld [vmem:[%s1 + $0xac] sm:$0xf]
  %v75 = vld [vmem:[%s1 + $0xb0] sm:$0xf]
  %v76 = vld [vmem:[%s1 + $0xb4] sm:$0xf]
  %v77 = vld [vmem:[%s1 + $0xb8] sm:$0xf]
  %v78 = vld [vmem:[%s1 + $0xbc] sm:$0xf]
  %v79 = vld [vmem:[%s1 + $0xc0] sm:$0xf]
  %v80 = vld [vmem:[%s1 + $0xc4] sm:$0xf]
  %v81 = vld [vmem:[%s1 + $0xc8] sm:$0xf]
  %v82 = vld [vmem:[%s1 + $0xcc] sm:$0xf]
  %v83 = vld [vmem:[%s1 + $0xd0] sm:$0xf]
  %v84 = vld [vmem:[%s1 + $0xd4] sm:$0xf]
  %v85 = vld [vmem:[%s1 + $0xd8] sm:$0xf]
  %v86 = vld [vmem:[%s1 + $0xdc] sm:$0xf]
  %v87 = vld [vmem:[%s1 + $0xe0] sm:$0xf]
  %v88 = vld [vmem:[%s1 + $0xe4] sm:$0xf]
  %v89 = vld [vmem:[%s1 + $0xe8] sm:$0xf]
  %v90 = vld [vmem:[%s1 + $0xec] sm:$0xf]
  %v91 = vld [vmem:[%s1 + $0xf0] sm:$0xf]
  %v92 = vld [vmem:[%s1 + $0xf4] sm:$0xf]
  %v93 = vld [vmem:[%s1 + $0xf8] sm:$0xf]
  %v94 = vld [vmem:[%s1 + $0xfc] sm:$0xf]
  %v111 = vunpack.c.l.b16 %v15
  %v112 = vunpack.c.h.b16 %v15
  %v113 = vunpack.c.l.b16 %v16
  %v114 = vunpack.c.h.b16 %v16
  %v115 = vunpack.c.l.b16 %v17
  %v116 = vunpack.c.h.b16 %v17
  %v117 = vunpack.c.l.b16 %v18
  %v118 = vunpack.c.h.b16 %v18
  %v119 = vunpack.c.l.b16 %v19
  %v120 = vunpack.c.h.b16 %v19
  %v121 = vunpack.c.l.b16 %v20
  %v122 = vunpack.c.h.b16 %v20
  %v123 = vunpack.c.l.b16 %v21
  %v124 = vunpack.c.h.b16 %v21
  %v125 = vunpack.c.l.b16 %v22
  %v126 = vunpack.c.h.b16 %v22
  %v127 = vunpack.c.l.b16 %v23
  %v128 = vunpack.c.h.b16 %v23
  %v129 = vunpack.c.l.b16 %v24
  %v130 = vunpack.c.h.b16 %v24
  %v131 = vunpack.c.l.b16 %v25
  %v132 = vunpack.c.h.b16 %v25
  %v133 = vunpack.c.l.b16 %v26
  %v134 = vunpack.c.h.b16 %v26
  %v135 = vunpack.c.l.b16 %v27
  %v136 = vunpack.c.h.b16 %v27
  %v137 = vunpack.c.l.b16 %v28
  %v138 = vunpack.c.h.b16 %v28
  %v139 = vunpack.c.l.b16 %v29
  %v140 = vunpack.c.h.b16 %v29
  %v141 = vunpack.c.l.b16 %v30
  %v142 = vunpack.c.h.b16 %v30
  %v143 = vpack.c.b16 %v115, %v111
  %v144 = vpack.c.b16 %v116, %v112
  %v145 = vpack.c.b16 %v117, %v113
  %v146 = vpack.c.b16 %v118, %v114
  %v147 = vpack.c.b16 %v123, %v119
  %v148 = vpack.c.b16 %v124, %v120
  %v149 = vpack.c.b16 %v125, %v121
  %v150 = vpack.c.b16 %v126, %v122
  %v151 = vpack.c.b16 %v131, %v127
  %v152 = vpack.c.b16 %v132, %v128
  %v153 = vpack.c.b16 %v133, %v129
  %v154 = vpack.c.b16 %v134, %v130
  %v155 = vpack.c.b16 %v139, %v135
  %v156 = vpack.c.b16 %v140, %v136
  %v157 = vpack.c.b16 %v141, %v137
  %v158 = vpack.c.b16 %v142, %v138
  %v239 = vunpack.c.l.b16 %v31
  %v240 = vunpack.c.l.b16 %v32
  %v241 = vunpack.c.l.b16 %v33
  %v242 = vunpack.c.l.b16 %v34
  %v243 = vunpack.c.l.b16 %v35
  %v244 = vunpack.c.l.b16 %v36
  %v245 = vunpack.c.l.b16 %v37
  %v246 = vunpack.c.l.b16 %v38
  %v247 = vunpack.c.l.b16 %v39
  %v248 = vunpack.c.l.b16 %v40
  %v249 = vunpack.c.l.b16 %v41
  %v250 = vunpack.c.l.b16 %v42
  %v251 = vunpack.c.l.b16 %v43
  %v252 = vunpack.c.l.b16 %v44
  %v253 = vunpack.c.l.b16 %v45
  %v254 = vunpack.c.l.b16 %v46
  %v255 = vunpack.c.l.b16 %v47
  %v256 = vunpack.c.l.b16 %v48
  %v257 = vunpack.c.l.b16 %v49
  %v258 = vunpack.c.l.b16 %v50
  %v259 = vunpack.c.l.b16 %v51
  %v260 = vunpack.c.l.b16 %v52
  %v261 = vunpack.c.l.b16 %v53
  %v262 = vunpack.c.l.b16 %v54
  %v263 = vunpack.c.l.b16 %v55
  %v264 = vunpack.c.l.b16 %v56
  %v265 = vunpack.c.l.b16 %v57
  %v266 = vunpack.c.l.b16 %v58
  %v267 = vunpack.c.l.b16 %v59
  %v268 = vunpack.c.l.b16 %v60
  %v269 = vunpack.c.l.b16 %v61
  %v270 = vunpack.c.l.b16 %v62
  %v271 = vunpack.c.l.b16 %v63
  %v272 = vunpack.c.l.b16 %v64
  %v273 = vunpack.c.l.b16 %v65
  %v274 = vunpack.c.l.b16 %v66
  %v275 = vunpack.c.l.b16 %v67
  %v276 = vunpack.c.l.b16 %v68
  %v277 = vunpack.c.l.b16 %v69
  %v278 = vunpack.c.l.b16 %v70
  %v279 = vunpack.c.l.b16 %v71
  %v280 = vunpack.c.l.b16 %v72
  %v281 = vunpack.c.l.b16 %v73
  %v282 = vunpack.c.l.b16 %v74
  %v283 = vunpack.c.l.b16 %v75
  %v284 = vunpack.c.l.b16 %v76
  %v285 = vunpack.c.l.b16 %v77
  %v286 = vunpack.c.l.b16 %v78
  %v287 = vunpack.c.l.b16 %v79
  %v288 = vunpack.c.l.b16 %v80
  %v289 = vunpack.c.l.b16 %v81
  %v290 = vunpack.c.l.b16 %v82
  %v291 = vunpack.c.l.b16 %v83
  %v292 = vunpack.c.l.b16 %v84
  %v293 = vunpack.c.l.b16 %v85
  %v294 = vunpack.c.l.b16 %v86
  %v295 = vunpack.c.l.b16 %v87
  %v296 = vunpack.c.l.b16 %v88
  %v297 = vunpack.c.l.b16 %v89
  %v298 = vunpack.c.l.b16 %v90
  %v299 = vunpack.c.l.b16 %v91
  %v300 = vunpack.c.l.b16 %v92
  %v301 = vunpack.c.l.b16 %v93
  %v302 = vunpack.c.l.b16 %v94
  %v303 = vpack.c.b16 %v240, %v239
  %v304 = vpack.c.b16 %v242, %v241
  %v305 = vpack.c.b16 %v244, %v243
  %v306 = vpack.c.b16 %v246, %v245
  %v307 = vpack.c.b16 %v248, %v247
  %v308 = vpack.c.b16 %v250, %v249
  %v309 = vpack.c.b16 %v252, %v251
  %v310 = vpack.c.b16 %v254, %v253
  %v311 = vpack.c.b16 %v256, %v255
  %v312 = vpack.c.b16 %v258, %v257
  %v313 = vpack.c.b16 %v260, %v259
  %v314 = vpack.c.b16 %v262, %v261
  %v315 = vpack.c.b16 %v264, %v263
  %v316 = vpack.c.b16 %v266, %v265
  %v317 = vpack.c.b16 %v268, %v267
  %v318 = vpack.c.b16 %v270, %v269
  %v319 = vpack.c.b16 %v272, %v271
  %v320 = vpack.c.b16 %v274, %v273
  %v321 = vpack.c.b16 %v276, %v275
  %v322 = vpack.c.b16 %v278, %v277
  %v323 = vpack.c.b16 %v280, %v279
  %v324 = vpack.c.b16 %v282, %v281
  %v325 = vpack.c.b16 %v284, %v283
  %v326 = vpack.c.b16 %v286, %v285
  %v327 = vpack.c.b16 %v288, %v287
  %v328 = vpack.c.b16 %v290, %v289
  %v329 = vpack.c.b16 %v292, %v291
  %v330 = vpack.c.b16 %v294, %v293
  %v331 = vpack.c.b16 %v296, %v295
  %v332 = vpack.c.b16 %v298, %v297
  %v333 = vpack.c.b16 %v300, %v299
  %v334 = vpack.c.b16 %v302, %v301
  %367 = vmatprep.subr.bf16.mxu0 0
  %368 = vmatpush1.bf16.msra.mxu0 %v310
  %369 = vmatprep.subr.bf16.mxu0 0
  %370 = vmatpush1.bf16.msra.mxu0 %v309
  %371 = vmatprep.subr.bf16.mxu0 0
  %372 = vmatpush1.bf16.msra.mxu0 %v308
  %373 = vmatprep.subr.bf16.mxu0 0
  %374 = vmatpush1.bf16.msra.mxu0 %v307
  %375 = vmatprep.subr.bf16.mxu0 0
  %376 = vmatpush1.bf16.msra.mxu0 %v306
  %377 = vmatprep.subr.bf16.mxu0 0
  %378 = vmatpush1.bf16.msra.mxu0 %v305
  %379 = vmatprep.subr.bf16.mxu0 0
  %380 = vmatpush1.bf16.msra.mxu0 %v304
  %381 = vmatprep.subr.bf16.mxu0 0
  %382 = vmatpush1.bf16.msra.mxu0 %v303
  %383 = vmatprep.subr.bf16.mxu0 0
  %384 = vmatpush2.bf16.msra.mxu0 %v318
  %385 = vmatprep.subr.bf16.mxu0 0
  %386 = vmatpush2.bf16.msra.mxu0 %v317
  %387 = vmatprep.subr.bf16.mxu0 0
  %388 = vmatpush2.bf16.msra.mxu0 %v316
  %389 = vmatprep.subr.bf16.mxu0 0
  %390 = vmatpush2.bf16.msra.mxu0 %v315
  %391 = vmatprep.subr.bf16.mxu0 0
  %392 = vmatpush2.bf16.msra.mxu0 %v314
  %393 = vmatprep.subr.bf16.mxu0 0
  %394 = vmatpush2.bf16.msra.mxu0 %v313
  %395 = vmatprep.subr.bf16.mxu0 0
  %396 = vmatpush2.bf16.msra.mxu0 %v312
  %397 = vmatprep.subr.bf16.mxu0 0
  %398 = vmatpush2.bf16.msra.mxu0 %v311
  %399 = vmatprep.mubr.bf16.mxu0 %v144
  %400 = vmatmul.mubr.bf16.gmra.mxu0 %v143
  %v401 = vpop.f32.mrf.mxu0
  %v402 = vadd.f32 0.0, %v401
  %v403 = vpop.f32.mrf.mxu0
  %v404 = vpop.f32.mrf.mxu0
  %v405 = vadd.f32 0.0, %v404
  %v406 = vpop.f32.mrf.mxu0
  %407 = vmatprep.mubr.bf16.mxu0 %v148
  %408 = vmatmul.mubr.bf16.gmra.mxu0 %v147
  %v409 = vpop.f32.mrf.mxu0
  %v410 = vadd.f32 0.0, %v409
  %v411 = vpop.f32.mrf.mxu0
  %v412 = vpop.f32.mrf.mxu0
  %v413 = vadd.f32 0.0, %v412
  %v414 = vpop.f32.mrf.mxu0
  %415 = vmatprep.mubr.bf16.mxu0 %v152
  %416 = vmatmul.mubr.bf16.gmra.mxu0 %v151
  %v417 = vpop.f32.mrf.mxu0
  %v418 = vadd.f32 0.0, %v417
  %v419 = vpop.f32.mrf.mxu0
  %v420 = vpop.f32.mrf.mxu0
  %v421 = vadd.f32 0.0, %v420
  %v422 = vpop.f32.mrf.mxu0
  %423 = vmatprep.mubr.bf16.mxu0 %v156
  %424 = vmatmul.mubr.bf16.gmra.mxu0 %v155
  %v425 = vpop.f32.mrf.mxu0
  %v426 = vadd.f32 0.0, %v425
  %v427 = vpop.f32.mrf.mxu0
  %v428 = vpop.f32.mrf.mxu0
  %v429 = vadd.f32 0.0, %v428
  %v430 = vpop.f32.mrf.mxu0
  %431 = vdwg.mxu0
  %432 = vmatprep.subr.bf16.mxu0 0
  %433 = vmatpush1.bf16.msra.mxu0 %v326
  %434 = vmatprep.subr.bf16.mxu0 0
  %435 = vmatpush1.bf16.msra.mxu0 %v325
  %436 = vmatprep.subr.bf16.mxu0 0
  %437 = vmatpush1.bf16.msra.mxu0 %v324
  %438 = vmatprep.subr.bf16.mxu0 0
  %439 = vmatpush1.bf16.msra.mxu0 %v323
  %440 = vmatprep.subr.bf16.mxu0 0
  %441 = vmatpush1.bf16.msra.mxu0 %v322
  %442 = vmatprep.subr.bf16.mxu0 0
  %443 = vmatpush1.bf16.msra.mxu0 %v321
  %444 = vmatprep.subr.bf16.mxu0 0
  %445 = vmatpush1.bf16.msra.mxu0 %v320
  %446 = vmatprep.subr.bf16.mxu0 0
  %447 = vmatpush1.bf16.msra.mxu0 %v319
  %448 = vmatprep.subr.bf16.mxu0 0
  %449 = vmatpush2.bf16.msra.mxu0 %v334
  %450 = vmatprep.subr.bf16.mxu0 0
  %451 = vmatpush2.bf16.msra.mxu0 %v333
  %452 = vmatprep.subr.bf16.mxu0 0
  %453 = vmatpush2.bf16.msra.mxu0 %v332
  %454 = vmatprep.subr.bf16.mxu0 0
  %455 = vmatpush2.bf16.msra.mxu0 %v331
  %456 = vmatprep.subr.bf16.mxu0 0
  %457 = vmatpush2.bf16.msra.mxu0 %v330
  %458 = vmatprep.subr.bf16.mxu0 0
  %459 = vmatpush2.bf16.msra.mxu0 %v329
  %460 = vmatprep.subr.bf16.mxu0 0
  %461 = vmatpush2.bf16.msra.mxu0 %v328
  %462 = vmatprep.subr.bf16.mxu0 0
  %463 = vmatpush2.bf16.msra.mxu0 %v327
  %464 = vmatprep.mubr.bf16.mxu0 %v146
  %465 = vmatmul.mubr.bf16.gmra.mxu0 %v145
  %v466 = vpop.f32.mrf.mxu0
  %v467 = vadd.f32 %v402, %v466
  %v468 = vpop.f32.mrf.mxu0
  %v469 = vpop.f32.mrf.mxu0
  %v470 = vadd.f32 %v405, %v469
  %v471 = vpop.f32.mrf.mxu0
  %472 = vmatprep.mubr.bf16.mxu0 %v150
  %473 = vmatmul.mubr.bf16.gmra.mxu0 %v149
  %v474 = vpop.f32.mrf.mxu0
  %v475 = vadd.f32 %v410, %v474
  %v476 = vpop.f32.mrf.mxu0
  %v477 = vpop.f32.mrf.mxu0
  %v478 = vadd.f32 %v413, %v477
  %v479 = vpop.f32.mrf.mxu0
  %480 = vmatprep.mubr.bf16.mxu0 %v154
  %481 = vmatmul.mubr.bf16.gmra.mxu0 %v153
  %v482 = vpop.f32.mrf.mxu0
  %v483 = vadd.f32 %v418, %v482
  %v484 = vpop.f32.mrf.mxu0
  %v485 = vpop.f32.mrf.mxu0
  %v486 = vadd.f32 %v421, %v485
  %v487 = vpop.f32.mrf.mxu0
  %488 = vmatprep.mubr.bf16.mxu0 %v158
  %489 = vmatmul.mubr.bf16.gmra.mxu0 %v157
  %v490 = vpop.f32.mrf.mxu0
  %v491 = vadd.f32 %v426, %v490
  %v492 = vpop.f32.mrf.mxu0
  %v493 = vpop.f32.mrf.mxu0
  %v494 = vadd.f32 %v429, %v493
  %v495 = vpop.f32.mrf.mxu0
  %496 = vdwg.mxu0
  %v497 = vpack.c.bf16 %v470, %v467
  %v498 = vpack.c.bf16 %v478, %v475
  %v499 = vpack.c.bf16 %v486, %v483
  %v500 = vpack.c.bf16 %v494, %v491
  %v505 = vunpack.c.l.b16 %v497
  %v506 = vunpack.c.h.b16 %v497
  %v507 = vunpack.c.l.b16 %v498
  %v508 = vunpack.c.h.b16 %v498
  %v509 = vunpack.c.l.b16 %v499
  %v510 = vunpack.c.h.b16 %v499
  %v511 = vunpack.c.l.b16 %v500
  %v512 = vunpack.c.h.b16 %v500
  %v513 = vpack.c.b16 %v505, %v505
  %v514 = vpack.c.b16 %v506, %v506
  %v515 = vpack.c.b16 %v507, %v507
  %v516 = vpack.c.b16 %v508, %v508
  %v517 = vpack.c.b16 %v509, %v509
  %v518 = vpack.c.b16 %v510, %v510
  %v519 = vpack.c.b16 %v511, %v511
  %v520 = vpack.c.b16 %v512, %v512
  %vm529 = vcmask 257024
  %530 = vst.msk [vmem:[%s2] sm:$0xf] %vm529, %v513
  %531 = vst.msk [vmem:[%s2 + $0x4] sm:$0xf] %vm529, %v514
  %532 = vst.msk [vmem:[%s2 + $0x8] sm:$0xf] %vm529, %v515
  %533 = vst.msk [vmem:[%s2 + $0xc] sm:$0xf] %vm529, %v516
  %534 = vst.msk [vmem:[%s2 + $0x10] sm:$0xf] %vm529, %v517
  %535 = vst.msk [vmem:[%s2 + $0x14] sm:$0xf] %vm529, %v518
  %536 = vst.msk [vmem:[%s2 + $0x18] sm:$0xf] %vm529, %v519
  %537 = vst.msk [vmem:[%s2 + $0x1c] sm:$0xf] %vm529, %v520
  %vm538 = vcmask 261120
  %v539 = vsel %vm538, %v467, 0.0
  %540 = vadd.xlane.f32.xlu0 %v539
  %v541 = vpop.xlane.xlu0 %540
  %v542 = vsel %vm538, %v470, 0.0
  %543 = vadd.xlane.f32.xlu0 %v542
  %v544 = vpop.xlane.xlu0 %543
  %v545 = vsel %vm538, %v475, 0.0
  %546 = vadd.xlane.f32.xlu0 %v545
  %v547 = vpop.xlane.xlu0 %546
  %v548 = vsel %vm538, %v478, 0.0
  %549 = vadd.xlane.f32.xlu0 %v548
  %v550 = vpop.xlane.xlu0 %549
  %v551 = vsel %vm538, %v483, 0.0
  %552 = vadd.xlane.f32.xlu0 %v551
  %v553 = vpop.xlane.xlu0 %552
  %v554 = vsel %vm538, %v486, 0.0
  %555 = vadd.xlane.f32.xlu0 %v554
  %v556 = vpop.xlane.xlu0 %555
  %v557 = vsel %vm538, %v491, 0.0
  %558 = vadd.xlane.f32.xlu0 %v557
  %v559 = vpop.xlane.xlu0 %558
  %v560 = vsel %vm538, %v494, 0.0
  %561 = vadd.xlane.f32.xlu0 %v560
  %v562 = vpop.xlane.xlu0 %561
  %vm563 = vcmask 7168
  %564 = vst.msk [vmem:[%s3] sm:$0xff] %vm563, %v541
  %565 = vst.msk [vmem:[%s3 + $0x8] sm:$0xff] %vm563, %v544
  %566 = vst.msk [vmem:[%s3 + $0x10] sm:$0xff] %vm563, %v547
  %567 = vst.msk [vmem:[%s3 + $0x18] sm:$0xff] %vm563, %v550
  %568 = vst.msk [vmem:[%s3 + $0x20] sm:$0xff] %vm563, %v553
  %569 = vst.msk [vmem:[%s3 + $0x28] sm:$0xff] %vm563, %v556
  %570 = vst.msk [vmem:[%s3 + $0x30] sm:$0xff] %vm563, %v559
  %571 = vst.msk [vmem:[%s3 + $0x38] sm:$0xff] %vm563, %v562
  %v572 = vmul.f32 %v467, %v467
  %v573 = vmul.f32 %v470, %v470
  %v574 = vmul.f32 %v475, %v475
  %v575 = vmul.f32 %v478, %v478
  %v576 = vmul.f32 %v483, %v483
  %v577 = vmul.f32 %v486, %v486
  %v578 = vmul.f32 %v491, %v491
  %v579 = vmul.f32 %v494, %v494
  %v580 = vsel %vm538, %v572, 0.0
  %581 = vadd.xlane.f32.xlu0 %v580
  %v582 = vpop.xlane.xlu0 %581
  %v583 = vsel %vm538, %v573, 0.0
  %584 = vadd.xlane.f32.xlu0 %v583
  %v585 = vpop.xlane.xlu0 %584
  %v586 = vsel %vm538, %v574, 0.0
  %587 = vadd.xlane.f32.xlu0 %v586
  %v588 = vpop.xlane.xlu0 %587
  %v589 = vsel %vm538, %v575, 0.0
  %590 = vadd.xlane.f32.xlu0 %v589
  %v591 = vpop.xlane.xlu0 %590
  %v592 = vsel %vm538, %v576, 0.0
  %593 = vadd.xlane.f32.xlu0 %v592
  %v594 = vpop.xlane.xlu0 %593
  %v595 = vsel %vm538, %v577, 0.0
  %596 = vadd.xlane.f32.xlu0 %v595
  %v597 = vpop.xlane.xlu0 %596
  %v598 = vsel %vm538, %v578, 0.0
  %599 = vadd.xlane.f32.xlu0 %v598
  %v600 = vpop.xlane.xlu0 %599
  %v601 = vsel %vm538, %v579, 0.0
  %602 = vadd.xlane.f32.xlu0 %v601
  %v603 = vpop.xlane.xlu0 %602
  %604 = vst.msk [vmem:[%s4] sm:$0xff] %vm563, %v582
  %605 = vst.msk [vmem:[%s4 + $0x8] sm:$0xff] %vm563, %v585
  %606 = vst.msk [vmem:[%s4 + $0x10] sm:$0xff] %vm563, %v588
  %607 = vst.msk [vmem:[%s4 + $0x18] sm:$0xff] %vm563, %v591
  %608 = vst.msk [vmem:[%s4 + $0x20] sm:$0xff] %vm563, %v594
  %609 = vst.msk [vmem:[%s4 + $0x28] sm:$0xff] %vm563, %v597
  %610 = vst.msk [vmem:[%s4 + $0x30] sm:$0xff] %vm563, %v600
  %611 = vst.msk [vmem:[%s4 + $0x38] sm:$0xff] %vm563, %v603
  // Predicated region
  $region10: #{discriminator_forward.6} parent=0 // pred_check
    _
  $region11: #{discriminator_forward.6} parent=0 // pred_check_branch
    %613 = sbr.rel (0) target = $region13
  $region12: #{discriminator_forward.6} parent=0 // pred_region
    _
  $region13: #{discriminator_forward.6} parent=0 // pred_fallthru
    _
  // Predicated region
  $region14: #{discriminator_forward.6} parent=0 // pred_check
    _
  $region15: #{discriminator_forward.6} parent=0 // pred_check_branch
    %615 = sbr.rel (0) target = $region17
  $region16: #{discriminator_forward.6} parent=0 // pred_region
    _
  $region17: #{discriminator_forward.6} parent=0 // pred_fallthru
    _
  // Predicated region
  $region18: #{discriminator_forward.6} parent=0 // pred_check
    _
  $region19: #{discriminator_forward.6} parent=0 // pred_check_branch
    %617 = sbr.rel (0) target = $region21
  $region20: #{discriminator_forward.6} parent=0 // pred_region
    _
  $region21: #{discriminator_forward.6} parent=0 // pred_fallthru
    _
  // Predicated region
  $region22: #{discriminator_forward.6} parent=0 // pred_check
    _
  $region23: #{discriminator_forward.6} parent=0 // pred_check_branch
    %619 = sbr.rel (0) target = $region25
  $region24: #{discriminator_forward.6} parent=0 // pred_region
    _
  $region25: #{discriminator_forward.6} parent=0 // pred_fallthru
    _
  // Predicated region
  $region26: #{discriminator_forward.6} parent=0 // pred_check
    _
  $region27: #{discriminator_forward.6} parent=0 // pred_check_branch
    %621 = sbr.rel (0) target = $region29
  $region28: #{discriminator_forward.6} parent=0 // pred_region
    _
  $region29: #{discriminator_forward.6} parent=0 // pred_fallthru
    _
  // Predicated region
  $region30: #{discriminator_forward.6} parent=0 // pred_check
    _
  $region31: #{discriminator_forward.6} parent=0 // pred_check_branch
    %623 = sbr.rel (0) target = $region33
  $region32: #{discriminator_forward.6} parent=0 // pred_region
    _
  $region33: #{discriminator_forward.6} parent=0 // pred_fallthru
    _

// kernel: discriminator_forward.7
$region0: #{discriminator_forward.7}
  #allocation0 [shape = 'u32[]', space=smem, size = 0x4, offset = 0x4, fixed_abs, tag = 'smem constant byte address 0x4 - core index']
  #allocation1 [shape = 'u32[144,128]{1,0:T(1,128)}', space=vmem, size = 0x12000, scoped, tag = 'internal scratch']
  %s0 = inlined_call_operand.vmem [shape: bf16[128,1024], index: 0, kind: input, shape index: {}]
  %s1 = inlined_call_operand.vmem [shape: bf16[1024,2], index: 1, kind: input, shape index: {}]
  %s2 = inlined_call_operand.vmem [shape: f32[128,2], index: 2, kind: output, shape index: {}]
  %s3 = sld [smem:[#allocation0]]
  $region18: #{discriminator_forward.7} parent=0
    _
  %s5 = ssub.s32 1, %s3
  %s6 = scalar_select 0, %s5, %s3
  // Predicated region
  $region2: #{discriminator_forward.7} parent=0 // pred_check
    _
  $region3: #{discriminator_forward.7} parent=0 // pred_check_branch
    %8 = sbr.rel (0) target = $region5
  $region4: #{discriminator_forward.7} parent=0 // pred_region
    _
  $region5: #{discriminator_forward.7} parent=0 // pred_fallthru
    _
  // Predicated region
  $region6: #{discriminator_forward.7} parent=0 // pred_check
    _
  $region7: #{discriminator_forward.7} parent=0 // pred_check_branch
    %10 = sbr.rel (0) target = $region9
  $region8: #{discriminator_forward.7} parent=0 // pred_region
    _
  $region9: #{discriminator_forward.7} parent=0 // pred_fallthru
    _
  %v12 = vld [vmem:[%s0] sm:$0xff]
  %v13 = vld [vmem:[%s0 + $0x8] sm:$0xff]
  %v14 = vld [vmem:[%s0 + $0x10] sm:$0xff]
  %v15 = vld [vmem:[%s0 + $0x18] sm:$0xff]
  %v16 = vld [vmem:[%s0 + $0x20] sm:$0xff]
  %v17 = vld [vmem:[%s0 + $0x28] sm:$0xff]
  %v18 = vld [vmem:[%s0 + $0x30] sm:$0xff]
  %v19 = vld [vmem:[%s0 + $0x38] sm:$0xff]
  %v20 = vld [vmem:[%s0 + $0x40] sm:$0xff]
  %v21 = vld [vmem:[%s0 + $0x48] sm:$0xff]
  %v22 = vld [vmem:[%s0 + $0x50] sm:$0xff]
  %v23 = vld [vmem:[%s0 + $0x58] sm:$0xff]
  %v24 = vld [vmem:[%s0 + $0x60] sm:$0xff]
  %v25 = vld [vmem:[%s0 + $0x68] sm:$0xff]
  %v26 = vld [vmem:[%s0 + $0x70] sm:$0xff]
  %v27 = vld [vmem:[%s0 + $0x78] sm:$0xff]
  %v28 = vld [vmem:[%s0 + $0x80] sm:$0xff]
  %v29 = vld [vmem:[%s0 + $0x88] sm:$0xff]
  %v30 = vld [vmem:[%s0 + $0x90] sm:$0xff]
  %v31 = vld [vmem:[%s0 + $0x98] sm:$0xff]
  %v32 = vld [vmem:[%s0 + $0xa0] sm:$0xff]
  %v33 = vld [vmem:[%s0 + $0xa8] sm:$0xff]
  %v34 = vld [vmem:[%s0 + $0xb0] sm:$0xff]
  %v35 = vld [vmem:[%s0 + $0xb8] sm:$0xff]
  %v36 = vld [vmem:[%s0 + $0xc0] sm:$0xff]
  %v37 = vld [vmem:[%s0 + $0xc8] sm:$0xff]
  %v38 = vld [vmem:[%s0 + $0xd0] sm:$0xff]
  %v39 = vld [vmem:[%s0 + $0xd8] sm:$0xff]
  %v40 = vld [vmem:[%s0 + $0xe0] sm:$0xff]
  %v41 = vld [vmem:[%s0 + $0xe8] sm:$0xff]
  %v42 = vld [vmem:[%s0 + $0xf0] sm:$0xff]
  %v43 = vld [vmem:[%s0 + $0xf8] sm:$0xff]
  %v44 = vld [vmem:[%s0 + $0x100] sm:$0xff]
  %v45 = vld [vmem:[%s0 + $0x108] sm:$0xff]
  %v46 = vld [vmem:[%s0 + $0x110] sm:$0xff]
  %v47 = vld [vmem:[%s0 + $0x118] sm:$0xff]
  %v48 = vld [vmem:[%s0 + $0x120] sm:$0xff]
  %v49 = vld [vmem:[%s0 + $0x128] sm:$0xff]
  %v50 = vld [vmem:[%s0 + $0x130] sm:$0xff]
  %v51 = vld [vmem:[%s0 + $0x138] sm:$0xff]
  %v52 = vld [vmem:[%s0 + $0x140] sm:$0xff]
  %v53 = vld [vmem:[%s0 + $0x148] sm:$0xff]
  %v54 = vld [vmem:[%s0 + $0x150] sm:$0xff]
  %v55 = vld [vmem:[%s0 + $0x158] sm:$0xff]
  %v56 = vld [vmem:[%s0 + $0x160] sm:$0xff]
  %v57 = vld [vmem:[%s0 + $0x168] sm:$0xff]
  %v58 = vld [vmem:[%s0 + $0x170] sm:$0xff]
  %v59 = vld [vmem:[%s0 + $0x178] sm:$0xff]
  %v60 = vld [vmem:[%s0 + $0x180] sm:$0xff]
  %v61 = vld [vmem:[%s0 + $0x188] sm:$0xff]
  %v62 = vld [vmem:[%s0 + $0x190] sm:$0xff]
  %v63 = vld [vmem:[%s0 + $0x198] sm:$0xff]
  %v64 = vld [vmem:[%s0 + $0x1a0] sm:$0xff]
  %v65 = vld [vmem:[%s0 + $0x1a8] sm:$0xff]
  %v66 = vld [vmem:[%s0 + $0x1b0] sm:$0xff]
  %v67 = vld [vmem:[%s0 + $0x1b8] sm:$0xff]
  %v68 = vld [vmem:[%s0 + $0x1c0] sm:$0xff]
  %v69 = vld [vmem:[%s0 + $0x1c8] sm:$0xff]
  %v70 = vld [vmem:[%s0 + $0x1d0] sm:$0xff]
  %v71 = vld [vmem:[%s0 + $0x1d8] sm:$0xff]
  %v72 = vld [vmem:[%s0 + $0x1e0] sm:$0xff]
  %v73 = vld [vmem:[%s0 + $0x1e8] sm:$0xff]
  %v74 = vld [vmem:[%s0 + $0x1f0] sm:$0xff]
  %v75 = vld [vmem:[%s0 + $0x1f8] sm:$0xff]
  %v76 = vld [vmem:[%s1] sm:$0xf]
  %v77 = vld [vmem:[%s1 + $0x4] sm:$0xf]
  %v78 = vld [vmem:[%s1 + $0x8] sm:$0xf]
  %v79 = vld [vmem:[%s1 + $0xc] sm:$0xf]
  %v80 = vld [vmem:[%s1 + $0x10] sm:$0xf]
  %v81 = vld [vmem:[%s1 + $0x14] sm:$0xf]
  %v82 = vld [vmem:[%s1 + $0x18] sm:$0xf]
  %v83 = vld [vmem:[%s1 + $0x1c] sm:$0xf]
  %v84 = vld [vmem:[%s1 + $0x20] sm:$0xf]
  %v85 = vld [vmem:[%s1 + $0x24] sm:$0xf]
  %v86 = vld [vmem:[%s1 + $0x28] sm:$0xf]
  %v87 = vld [vmem:[%s1 + $0x2c] sm:$0xf]
  %v88 = vld [vmem:[%s1 + $0x30] sm:$0xf]
  %v89 = vld [vmem:[%s1 + $0x34] sm:$0xf]
  %v90 = vld [vmem:[%s1 + $0x38] sm:$0xf]
  %v91 = vld [vmem:[%s1 + $0x3c] sm:$0xf]
  %v92 = vld [vmem:[%s1 + $0x40] sm:$0xf]
  %v93 = vld [vmem:[%s1 + $0x44] sm:$0xf]
  %v94 = vld [vmem:[%s1 + $0x48] sm:$0xf]
  %v95 = vld [vmem:[%s1 + $0x4c] sm:$0xf]
  %v96 = vld [vmem:[%s1 + $0x50] sm:$0xf]
  %v97 = vld [vmem:[%s1 + $0x54] sm:$0xf]
  %v98 = vld [vmem:[%s1 + $0x58] sm:$0xf]
  %v99 = vld [vmem:[%s1 + $0x5c] sm:$0xf]
  %v100 = vld [vmem:[%s1 + $0x60] sm:$0xf]
  %v101 = vld [vmem:[%s1 + $0x64] sm:$0xf]
  %v102 = vld [vmem:[%s1 + $0x68] sm:$0xf]
  %v103 = vld [vmem:[%s1 + $0x6c] sm:$0xf]
  %v104 = vld [vmem:[%s1 + $0x70] sm:$0xf]
  %v105 = vld [vmem:[%s1 + $0x74] sm:$0xf]
  %v106 = vld [vmem:[%s1 + $0x78] sm:$0xf]
  %v107 = vld [vmem:[%s1 + $0x7c] sm:$0xf]
  %v108 = vld [vmem:[%s1 + $0x80] sm:$0xf]
  %v109 = vld [vmem:[%s1 + $0x84] sm:$0xf]
  %v110 = vld [vmem:[%s1 + $0x88] sm:$0xf]
  %v111 = vld [vmem:[%s1 + $0x8c] sm:$0xf]
  %v112 = vld [vmem:[%s1 + $0x90] sm:$0xf]
  %v113 = vld [vmem:[%s1 + $0x94] sm:$0xf]
  %v114 = vld [vmem:[%s1 + $0x98] sm:$0xf]
  %v115 = vld [vmem:[%s1 + $0x9c] sm:$0xf]
  %v116 = vld [vmem:[%s1 + $0xa0] sm:$0xf]
  %v117 = vld [vmem:[%s1 + $0xa4] sm:$0xf]
  %v118 = vld [vmem:[%s1 + $0xa8] sm:$0xf]
  %v119 = vld [vmem:[%s1 + $0xac] sm:$0xf]
  %v120 = vld [vmem:[%s1 + $0xb0] sm:$0xf]
  %v121 = vld [vmem:[%s1 + $0xb4] sm:$0xf]
  %v122 = vld [vmem:[%s1 + $0xb8] sm:$0xf]
  %v123 = vld [vmem:[%s1 + $0xbc] sm:$0xf]
  %v124 = vld [vmem:[%s1 + $0xc0] sm:$0xf]
  %v125 = vld [vmem:[%s1 + $0xc4] sm:$0xf]
  %v126 = vld [vmem:[%s1 + $0xc8] sm:$0xf]
  %v127 = vld [vmem:[%s1 + $0xcc] sm:$0xf]
  %v128 = vld [vmem:[%s1 + $0xd0] sm:$0xf]
  %v129 = vld [vmem:[%s1 + $0xd4] sm:$0xf]
  %v130 = vld [vmem:[%s1 + $0xd8] sm:$0xf]
  %v131 = vld [vmem:[%s1 + $0xdc] sm:$0xf]
  %v132 = vld [vmem:[%s1 + $0xe0] sm:$0xf]
  %v133 = vld [vmem:[%s1 + $0xe4] sm:$0xf]
  %v134 = vld [vmem:[%s1 + $0xe8] sm:$0xf]
  %v135 = vld [vmem:[%s1 + $0xec] sm:$0xf]
  %v136 = vld [vmem:[%s1 + $0xf0] sm:$0xf]
  %v137 = vld [vmem:[%s1 + $0xf4] sm:$0xf]
  %v138 = vld [vmem:[%s1 + $0xf8] sm:$0xf]
  %v139 = vld [vmem:[%s1 + $0xfc] sm:$0xf]
  %v140 = vld [vmem:[%s1 + $0x100] sm:$0xf]
  %v141 = vld [vmem:[%s1 + $0x104] sm:$0xf]
  %v142 = vld [vmem:[%s1 + $0x108] sm:$0xf]
  %v143 = vld [vmem:[%s1 + $0x10c] sm:$0xf]
  %v144 = vld [vmem:[%s1 + $0x110] sm:$0xf]
  %v145 = vld [vmem:[%s1 + $0x114] sm:$0xf]
  %v146 = vld [vmem:[%s1 + $0x118] sm:$0xf]
  %v147 = vld [vmem:[%s1 + $0x11c] sm:$0xf]
  %v148 = vld [vmem:[%s1 + $0x120] sm:$0xf]
  %v149 = vld [vmem:[%s1 + $0x124] sm:$0xf]
  %v150 = vld [vmem:[%s1 + $0x128] sm:$0xf]
  %v151 = vld [vmem:[%s1 + $0x12c] sm:$0xf]
  %v152 = vld [vmem:[%s1 + $0x130] sm:$0xf]
  %v153 = vld [vmem:[%s1 + $0x134] sm:$0xf]
  %v154 = vld [vmem:[%s1 + $0x138] sm:$0xf]
  %v155 = vld [vmem:[%s1 + $0x13c] sm:$0xf]
  %v156 = vld [vmem:[%s1 + $0x140] sm:$0xf]
  %v157 = vld [vmem:[%s1 + $0x144] sm:$0xf]
  %v158 = vld [vmem:[%s1 + $0x148] sm:$0xf]
  %v159 = vld [vmem:[%s1 + $0x14c] sm:$0xf]
  %v160 = vld [vmem:[%s1 + $0x150] sm:$0xf]
  %v161 = vld [vmem:[%s1 + $0x154] sm:$0xf]
  %v162 = vld [vmem:[%s1 + $0x158] sm:$0xf]
  %v163 = vld [vmem:[%s1 + $0x15c] sm:$0xf]
  %v164 = vld [vmem:[%s1 + $0x160] sm:$0xf]
  %v165 = vld [vmem:[%s1 + $0x164] sm:$0xf]
  %v166 = vld [vmem:[%s1 + $0x168] sm:$0xf]
  %v167 = vld [vmem:[%s1 + $0x16c] sm:$0xf]
  %v168 = vld [vmem:[%s1 + $0x170] sm:$0xf]
  %v169 = vld [vmem:[%s1 + $0x174] sm:$0xf]
  %v170 = vld [vmem:[%s1 + $0x178] sm:$0xf]
  %v171 = vld [vmem:[%s1 + $0x17c] sm:$0xf]
  %v172 = vld [vmem:[%s1 + $0x180] sm:$0xf]
  %v173 = vld [vmem:[%s1 + $0x184] sm:$0xf]
  %v174 = vld [vmem:[%s1 + $0x188] sm:$0xf]
  %v175 = vld [vmem:[%s1 + $0x18c] sm:$0xf]
  %v176 = vld [vmem:[%s1 + $0x190] sm:$0xf]
  %v177 = vld [vmem:[%s1 + $0x194] sm:$0xf]
  %v178 = vld [vmem:[%s1 + $0x198] sm:$0xf]
  %v179 = vld [vmem:[%s1 + $0x19c] sm:$0xf]
  %v180 = vld [vmem:[%s1 + $0x1a0] sm:$0xf]
  %v181 = vld [vmem:[%s1 + $0x1a4] sm:$0xf]
  %v182 = vld [vmem:[%s1 + $0x1a8] sm:$0xf]
  %v183 = vld [vmem:[%s1 + $0x1ac] sm:$0xf]
  %v184 = vld [vmem:[%s1 + $0x1b0] sm:$0xf]
  %v185 = vld [vmem:[%s1 + $0x1b4] sm:$0xf]
  %v186 = vld [vmem:[%s1 + $0x1b8] sm:$0xf]
  %v187 = vld [vmem:[%s1 + $0x1bc] sm:$0xf]
  %v188 = vld [vmem:[%s1 + $0x1c0] sm:$0xf]
  %v189 = vld [vmem:[%s1 + $0x1c4] sm:$0xf]
  %v190 = vld [vmem:[%s1 + $0x1c8] sm:$0xf]
  %v191 = vld [vmem:[%s1 + $0x1cc] sm:$0xf]
  %v192 = vld [vmem:[%s1 + $0x1d0] sm:$0xf]
  %v193 = vld [vmem:[%s1 + $0x1d4] sm:$0xf]
  %v194 = vld [vmem:[%s1 + $0x1d8] sm:$0xf]
  %v195 = vld [vmem:[%s1 + $0x1dc] sm:$0xf]
  %v196 = vld [vmem:[%s1 + $0x1e0] sm:$0xf]
  %v197 = vld [vmem:[%s1 + $0x1e4] sm:$0xf]
  %v198 = vld [vmem:[%s1 + $0x1e8] sm:$0xf]
  %v199 = vld [vmem:[%s1 + $0x1ec] sm:$0xf]
  %v200 = vld [vmem:[%s1 + $0x1f0] sm:$0xf]
  %v201 = vld [vmem:[%s1 + $0x1f4] sm:$0xf]
  %v202 = vld [vmem:[%s1 + $0x1f8] sm:$0xf]
  %v203 = vld [vmem:[%s1 + $0x1fc] sm:$0xf]
  %v268 = vunpack.c.l.b16 %v12
  %v269 = vunpack.c.h.b16 %v12
  %v270 = vunpack.c.l.b16 %v13
  %v271 = vunpack.c.h.b16 %v13
  %v272 = vunpack.c.l.b16 %v14
  %v273 = vunpack.c.h.b16 %v14
  %v274 = vunpack.c.l.b16 %v15
  %v275 = vunpack.c.h.b16 %v15
  %v276 = vunpack.c.l.b16 %v16
  %v277 = vunpack.c.h.b16 %v16
  %v278 = vunpack.c.l.b16 %v17
  %v279 = vunpack.c.h.b16 %v17
  %v280 = vunpack.c.l.b16 %v18
  %v281 = vunpack.c.h.b16 %v18
  %v282 = vunpack.c.l.b16 %v19
  %v283 = vunpack.c.h.b16 %v19
  %v284 = vunpack.c.l.b16 %v20
  %v285 = vunpack.c.h.b16 %v20
  %v286 = vunpack.c.l.b16 %v21
  %v287 = vunpack.c.h.b16 %v21
  %v288 = vunpack.c.l.b16 %v22
  %v289 = vunpack.c.h.b16 %v22
  %v290 = vunpack.c.l.b16 %v23
  %v291 = vunpack.c.h.b16 %v23
  %v292 = vunpack.c.l.b16 %v24
  %v293 = vunpack.c.h.b16 %v24
  %v294 = vunpack.c.l.b16 %v25
  %v295 = vunpack.c.h.b16 %v25
  %v296 = vunpack.c.l.b16 %v26
  %v297 = vunpack.c.h.b16 %v26
  %v298 = vunpack.c.l.b16 %v27
  %v299 = vunpack.c.h.b16 %v27
  %v300 = vunpack.c.l.b16 %v28
  %v301 = vunpack.c.h.b16 %v28
  %v302 = vunpack.c.l.b16 %v29
  %v303 = vunpack.c.h.b16 %v29
  %v304 = vunpack.c.l.b16 %v30
  %v305 = vunpack.c.h.b16 %v30
  %v306 = vunpack.c.l.b16 %v31
  %v307 = vunpack.c.h.b16 %v31
  %v308 = vunpack.c.l.b16 %v32
  %v309 = vunpack.c.h.b16 %v32
  %v310 = vunpack.c.l.b16 %v33
  %v311 = vunpack.c.h.b16 %v33
  %v312 = vunpack.c.l.b16 %v34
  %v313 = vunpack.c.h.b16 %v34
  %v314 = vunpack.c.l.b16 %v35
  %v315 = vunpack.c.h.b16 %v35
  %v316 = vunpack.c.l.b16 %v36
  %v317 = vunpack.c.h.b16 %v36
  %v318 = vunpack.c.l.b16 %v37
  %v319 = vunpack.c.h.b16 %v37
  %v320 = vunpack.c.l.b16 %v38
  %v321 = vunpack.c.h.b16 %v38
  %v322 = vunpack.c.l.b16 %v39
  %v323 = vunpack.c.h.b16 %v39
  %v324 = vunpack.c.l.b16 %v40
  %v325 = vunpack.c.h.b16 %v40
  %v326 = vunpack.c.l.b16 %v41
  %v327 = vunpack.c.h.b16 %v41
  %v328 = vunpack.c.l.b16 %v42
  %v329 = vunpack.c.h.b16 %v42
  %v330 = vunpack.c.l.b16 %v43
  %v331 = vunpack.c.h.b16 %v43
  %v332 = vunpack.c.l.b16 %v44
  %v333 = vunpack.c.h.b16 %v44
  %v334 = vunpack.c.l.b16 %v45
  %v335 = vunpack.c.h.b16 %v45
  %v336 = vunpack.c.l.b16 %v46
  %v337 = vunpack.c.h.b16 %v46
  %v338 = vunpack.c.l.b16 %v47
  %v339 = vunpack.c.h.b16 %v47
  %v340 = vunpack.c.l.b16 %v48
  %v341 = vunpack.c.h.b16 %v48
  %v342 = vunpack.c.l.b16 %v49
  %v343 = vunpack.c.h.b16 %v49
  %v344 = vunpack.c.l.b16 %v50
  %v345 = vunpack.c.h.b16 %v50
  %v346 = vunpack.c.l.b16 %v51
  %v347 = vunpack.c.h.b16 %v51
  %v348 = vunpack.c.l.b16 %v52
  %v349 = vunpack.c.h.b16 %v52
  %v350 = vunpack.c.l.b16 %v53
  %v351 = vunpack.c.h.b16 %v53
  %v352 = vunpack.c.l.b16 %v54
  %v353 = vunpack.c.h.b16 %v54
  %v354 = vunpack.c.l.b16 %v55
  %v355 = vunpack.c.h.b16 %v55
  %v356 = vunpack.c.l.b16 %v56
  %v357 = vunpack.c.h.b16 %v56
  %v358 = vunpack.c.l.b16 %v57
  %v359 = vunpack.c.h.b16 %v57
  %v360 = vunpack.c.l.b16 %v58
  %v361 = vunpack.c.h.b16 %v58
  %v362 = vunpack.c.l.b16 %v59
  %v363 = vunpack.c.h.b16 %v59
  %v364 = vunpack.c.l.b16 %v60
  %v365 = vunpack.c.h.b16 %v60
  %v366 = vunpack.c.l.b16 %v61
  %v367 = vunpack.c.h.b16 %v61
  %v368 = vunpack.c.l.b16 %v62
  %v369 = vunpack.c.h.b16 %v62
  %v370 = vunpack.c.l.b16 %v63
  %v371 = vunpack.c.h.b16 %v63
  %v372 = vunpack.c.l.b16 %v64
  %v373 = vunpack.c.h.b16 %v64
  %v374 = vunpack.c.l.b16 %v65
  %v375 = vunpack.c.h.b16 %v65
  %v376 = vunpack.c.l.b16 %v66
  %v377 = vunpack.c.h.b16 %v66
  %v378 = vunpack.c.l.b16 %v67
  %v379 = vunpack.c.h.b16 %v67
  %v380 = vunpack.c.l.b16 %v68
  %v381 = vunpack.c.h.b16 %v68
  %v382 = vunpack.c.l.b16 %v69
  %v383 = vunpack.c.h.b16 %v69
  %v384 = vunpack.c.l.b16 %v70
  %v385 = vunpack.c.h.b16 %v70
  %v386 = vunpack.c.l.b16 %v71
  %v387 = vunpack.c.h.b16 %v71
  %v388 = vunpack.c.l.b16 %v72
  %v389 = vunpack.c.h.b16 %v72
  %v390 = vunpack.c.l.b16 %v73
  %v391 = vunpack.c.h.b16 %v73
  %v392 = vunpack.c.l.b16 %v74
  %v393 = vunpack.c.h.b16 %v74
  %v394 = vunpack.c.l.b16 %v75
  %v395 = vunpack.c.h.b16 %v75
  %v396 = vpack.c.b16 %v276, %v268
  %v397 = vpack.c.b16 %v277, %v269
  %v398 = vpack.c.b16 %v278, %v270
  %v399 = vpack.c.b16 %v279, %v271
  %v400 = vpack.c.b16 %v280, %v272
  %v401 = vpack.c.b16 %v281, %v273
  %v402 = vpack.c.b16 %v282, %v274
  %v403 = vpack.c.b16 %v283, %v275
  %v404 = vpack.c.b16 %v292, %v284
  %v405 = vpack.c.b16 %v293, %v285
  %v406 = vpack.c.b16 %v294, %v286
  %v407 = vpack.c.b16 %v295, %v287
  %v408 = vpack.c.b16 %v296, %v288
  %v409 = vpack.c.b16 %v297, %v289
  %v410 = vpack.c.b16 %v298, %v290
  %v411 = vpack.c.b16 %v299, %v291
  %v412 = vpack.c.b16 %v308, %v300
  %v413 = vpack.c.b16 %v309, %v301
  %v414 = vpack.c.b16 %v310, %v302
  %v415 = vpack.c.b16 %v311, %v303
  %v416 = vpack.c.b16 %v312, %v304
  %v417 = vpack.c.b16 %v313, %v305
  %v418 = vpack.c.b16 %v314, %v306
  %v419 = vpack.c.b16 %v315, %v307
  %v420 = vpack.c.b16 %v324, %v316
  %v421 = vpack.c.b16 %v325, %v317
  %v422 = vpack.c.b16 %v326, %v318
  %v423 = vpack.c.b16 %v327, %v319
  %v424 = vpack.c.b16 %v328, %v320
  %v425 = vpack.c.b16 %v329, %v321
  %v426 = vpack.c.b16 %v330, %v322
  %v427 = vpack.c.b16 %v331, %v323
  %v428 = vpack.c.b16 %v340, %v332
  %v429 = vpack.c.b16 %v341, %v333
  %v430 = vpack.c.b16 %v342, %v334
  %v431 = vpack.c.b16 %v343, %v335
  %v432 = vpack.c.b16 %v344, %v336
  %v433 = vpack.c.b16 %v345, %v337
  %v434 = vpack.c.b16 %v346, %v338
  %v435 = vpack.c.b16 %v347, %v339
  %v436 = vpack.c.b16 %v356, %v348
  %v437 = vpack.c.b16 %v357, %v349
  %v438 = vpack.c.b16 %v358, %v350
  %v439 = vpack.c.b16 %v359, %v351
  %v440 = vpack.c.b16 %v360, %v352
  %v441 = vpack.c.b16 %v361, %v353
  %v442 = vpack.c.b16 %v362, %v354
  %v443 = vpack.c.b16 %v363, %v355
  %v444 = vpack.c.b16 %v372, %v364
  %v445 = vpack.c.b16 %v373, %v365
  %v446 = vpack.c.b16 %v374, %v366
  %v447 = vpack.c.b16 %v375, %v367
  %v448 = vpack.c.b16 %v376, %v368
  %v449 = vpack.c.b16 %v377, %v369
  %v450 = vpack.c.b16 %v378, %v370
  %v451 = vpack.c.b16 %v379, %v371
  %v452 = vpack.c.b16 %v388, %v380
  %v453 = vpack.c.b16 %v389, %v381
  %v454 = vpack.c.b16 %v390, %v382
  %v455 = vpack.c.b16 %v391, %v383
  %v456 = vpack.c.b16 %v392, %v384
  %v457 = vpack.c.b16 %v393, %v385
  %v458 = vpack.c.b16 %v394, %v386
  %v459 = vpack.c.b16 %v395, %v387
  %v652 = vunpack.c.l.b16 %v76
  %v653 = vunpack.c.l.b16 %v77
  %v654 = vunpack.c.l.b16 %v78
  %v655 = vunpack.c.l.b16 %v79
  %v656 = vunpack.c.l.b16 %v80
  %v657 = vunpack.c.l.b16 %v81
  %v658 = vunpack.c.l.b16 %v82
  %v659 = vunpack.c.l.b16 %v83
  %v660 = vunpack.c.l.b16 %v84
  %v661 = vunpack.c.l.b16 %v85
  %v662 = vunpack.c.l.b16 %v86
  %v663 = vunpack.c.l.b16 %v87
  %v664 = vunpack.c.l.b16 %v88
  %v665 = vunpack.c.l.b16 %v89
  %v666 = vunpack.c.l.b16 %v90
  %v667 = vunpack.c.l.b16 %v91
  %v668 = vunpack.c.l.b16 %v92
  %v669 = vunpack.c.l.b16 %v93
  %v670 = vunpack.c.l.b16 %v94
  %v671 = vunpack.c.l.b16 %v95
  %v672 = vunpack.c.l.b16 %v96
  %v673 = vunpack.c.l.b16 %v97
  %v674 = vunpack.c.l.b16 %v98
  %v675 = vunpack.c.l.b16 %v99
  %v676 = vunpack.c.l.b16 %v100
  %v677 = vunpack.c.l.b16 %v101
  %v678 = vunpack.c.l.b16 %v102
  %v679 = vunpack.c.l.b16 %v103
  %v680 = vunpack.c.l.b16 %v104
  %v681 = vunpack.c.l.b16 %v105
  %v682 = vunpack.c.l.b16 %v106
  %v683 = vunpack.c.l.b16 %v107
  %v684 = vunpack.c.l.b16 %v108
  %v685 = vunpack.c.l.b16 %v109
  %v686 = vunpack.c.l.b16 %v110
  %v687 = vunpack.c.l.b16 %v111
  %v688 = vunpack.c.l.b16 %v112
  %v689 = vunpack.c.l.b16 %v113
  %v690 = vunpack.c.l.b16 %v114
  %v691 = vunpack.c.l.b16 %v115
  %v692 = vunpack.c.l.b16 %v116
  %v693 = vunpack.c.l.b16 %v117
  %v694 = vunpack.c.l.b16 %v118
  %v695 = vunpack.c.l.b16 %v119
  %v696 = vunpack.c.l.b16 %v120
  %v697 = vunpack.c.l.b16 %v121
  %v698 = vunpack.c.l.b16 %v122
  %v699 = vunpack.c.l.b16 %v123
  %v700 = vunpack.c.l.b16 %v124
  %v701 = vunpack.c.l.b16 %v125
  %v702 = vunpack.c.l.b16 %v126
  %v703 = vunpack.c.l.b16 %v127
  %v704 = vunpack.c.l.b16 %v128
  %v705 = vunpack.c.l.b16 %v129
  %v706 = vunpack.c.l.b16 %v130
  %v707 = vunpack.c.l.b16 %v131
  %v708 = vunpack.c.l.b16 %v132
  %v709 = vunpack.c.l.b16 %v133
  %v710 = vunpack.c.l.b16 %v134
  %v711 = vunpack.c.l.b16 %v135
  %v712 = vunpack.c.l.b16 %v136
  %v713 = vunpack.c.l.b16 %v137
  %v714 = vunpack.c.l.b16 %v138
  %v715 = vunpack.c.l.b16 %v139
  %v716 = vunpack.c.l.b16 %v140
  %v717 = vunpack.c.l.b16 %v141
  %v718 = vunpack.c.l.b16 %v142
  %v719 = vunpack.c.l.b16 %v143
  %v720 = vunpack.c.l.b16 %v144
  %v721 = vunpack.c.l.b16 %v145
  %v722 = vunpack.c.l.b16 %v146
  %v723 = vunpack.c.l.b16 %v147
  %v724 = vunpack.c.l.b16 %v148
  %v725 = vunpack.c.l.b16 %v149
  %v726 = vunpack.c.l.b16 %v150
  %v727 = vunpack.c.l.b16 %v151
  %v728 = vunpack.c.l.b16 %v152
  %v729 = vunpack.c.l.b16 %v153
  %v730 = vunpack.c.l.b16 %v154
  %v731 = vunpack.c.l.b16 %v155
  %v732 = vunpack.c.l.b16 %v156
  %v733 = vunpack.c.l.b16 %v157
  %v734 = vunpack.c.l.b16 %v158
  %v735 = vunpack.c.l.b16 %v159
  %v736 = vunpack.c.l.b16 %v160
  %v737 = vunpack.c.l.b16 %v161
  %v738 = vunpack.c.l.b16 %v162
  %v739 = vunpack.c.l.b16 %v163
  %v740 = vunpack.c.l.b16 %v164
  %v741 = vunpack.c.l.b16 %v165
  %v742 = vunpack.c.l.b16 %v166
  %v743 = vunpack.c.l.b16 %v167
  %v744 = vunpack.c.l.b16 %v168
  %v745 = vunpack.c.l.b16 %v169
  %v746 = vunpack.c.l.b16 %v170
  %v747 = vunpack.c.l.b16 %v171
  %v748 = vunpack.c.l.b16 %v172
  %v749 = vunpack.c.l.b16 %v173
  %v750 = vunpack.c.l.b16 %v174
  %v751 = vunpack.c.l.b16 %v175
  %v752 = vunpack.c.l.b16 %v176
  %v753 = vunpack.c.l.b16 %v177
  %v754 = vunpack.c.l.b16 %v178
  %v755 = vunpack.c.l.b16 %v179
  %v756 = vunpack.c.l.b16 %v180
  %v757 = vunpack.c.l.b16 %v181
  %v758 = vunpack.c.l.b16 %v182
  %v759 = vunpack.c.l.b16 %v183
  %v760 = vunpack.c.l.b16 %v184
  %v761 = vunpack.c.l.b16 %v185
  %v762 = vunpack.c.l.b16 %v186
  %v763 = vunpack.c.l.b16 %v187
  %v764 = vunpack.c.l.b16 %v188
  %v765 = vunpack.c.l.b16 %v189
  %v766 = vunpack.c.l.b16 %v190
  %v767 = vunpack.c.l.b16 %v191
  %v768 = vunpack.c.l.b16 %v192
  %v769 = vunpack.c.l.b16 %v193
  %v770 = vunpack.c.l.b16 %v194
  %v771 = vunpack.c.l.b16 %v195
  %v772 = vunpack.c.l.b16 %v196
  %v773 = vunpack.c.l.b16 %v197
  %v774 = vunpack.c.l.b16 %v198
  %v775 = vunpack.c.l.b16 %v199
  %v776 = vunpack.c.l.b16 %v200
  %v777 = vunpack.c.l.b16 %v201
  %v778 = vunpack.c.l.b16 %v202
  %v779 = vunpack.c.l.b16 %v203
  %v780 = vpack.c.b16 %v653, %v652
  %v781 = vpack.c.b16 %v655, %v654
  %v782 = vpack.c.b16 %v657, %v656
  %v783 = vpack.c.b16 %v659, %v658
  %v784 = vpack.c.b16 %v661, %v660
  %v785 = vpack.c.b16 %v663, %v662
  %v786 = vpack.c.b16 %v665, %v664
  %v787 = vpack.c.b16 %v667, %v666
  %v788 = vpack.c.b16 %v669, %v668
  %v789 = vpack.c.b16 %v671, %v670
  %v790 = vpack.c.b16 %v673, %v672
  %v791 = vpack.c.b16 %v675, %v674
  %v792 = vpack.c.b16 %v677, %v676
  %v793 = vpack.c.b16 %v679, %v678
  %v794 = vpack.c.b16 %v681, %v680
  %v795 = vpack.c.b16 %v683, %v682
  %v796 = vpack.c.b16 %v685, %v684
  %v797 = vpack.c.b16 %v687, %v686
  %v798 = vpack.c.b16 %v689, %v688
  %v799 = vpack.c.b16 %v691, %v690
  %v800 = vpack.c.b16 %v693, %v692
  %v801 = vpack.c.b16 %v695, %v694
  %v802 = vpack.c.b16 %v697, %v696
  %v803 = vpack.c.b16 %v699, %v698
  %v804 = vpack.c.b16 %v701, %v700
  %v805 = vpack.c.b16 %v703, %v702
  %v806 = vpack.c.b16 %v705, %v704
  %v807 = vpack.c.b16 %v707, %v706
  %v808 = vpack.c.b16 %v709, %v708
  %v809 = vpack.c.b16 %v711, %v710
  %v810 = vpack.c.b16 %v713, %v712
  %v811 = vpack.c.b16 %v715, %v714
  %v812 = vpack.c.b16 %v717, %v716
  %v813 = vpack.c.b16 %v719, %v718
  %v814 = vpack.c.b16 %v721, %v720
  %v815 = vpack.c.b16 %v723, %v722
  %v816 = vpack.c.b16 %v725, %v724
  %v817 = vpack.c.b16 %v727, %v726
  %v818 = vpack.c.b16 %v729, %v728
  %v819 = vpack.c.b16 %v731, %v730
  %v820 = vpack.c.b16 %v733, %v732
  %v821 = vpack.c.b16 %v735, %v734
  %v822 = vpack.c.b16 %v737, %v736
  %v823 = vpack.c.b16 %v739, %v738
  %v824 = vpack.c.b16 %v741, %v740
  %v825 = vpack.c.b16 %v743, %v742
  %v826 = vpack.c.b16 %v745, %v744
  %v827 = vpack.c.b16 %v747, %v746
  %v828 = vpack.c.b16 %v749, %v748
  %v829 = vpack.c.b16 %v751, %v750
  %v830 = vpack.c.b16 %v753, %v752
  %v831 = vpack.c.b16 %v755, %v754
  %v832 = vpack.c.b16 %v757, %v756
  %v833 = vpack.c.b16 %v759, %v758
  %v834 = vpack.c.b16 %v761, %v760
  %v835 = vpack.c.b16 %v763, %v762
  %v836 = vpack.c.b16 %v765, %v764
  %v837 = vpack.c.b16 %v767, %v766
  %v838 = vpack.c.b16 %v769, %v768
  %v839 = vpack.c.b16 %v771, %v770
  %v840 = vpack.c.b16 %v773, %v772
  %v841 = vpack.c.b16 %v775, %v774
  %v842 = vpack.c.b16 %v777, %v776
  %v843 = vpack.c.b16 %v779, %v778
  %908 = vmatprep.subr.bf16.mxu0 0
  %909 = vmatpush1.bf16.msra.mxu0 %v787
  %910 = vmatprep.subr.bf16.mxu0 0
  %911 = vmatpush1.bf16.msra.mxu0 %v786
  %912 = vmatprep.subr.bf16.mxu0 0
  %913 = vmatpush1.bf16.msra.mxu0 %v785
  %914 = vmatprep.subr.bf16.mxu0 0
  %915 = vmatpush1.bf16.msra.mxu0 %v784
  %916 = vmatprep.subr.bf16.mxu0 0
  %917 = vmatpush1.bf16.msra.mxu0 %v783
  %918 = vmatprep.subr.bf16.mxu0 0
  %919 = vmatpush1.bf16.msra.mxu0 %v782
  %920 = vmatprep.subr.bf16.mxu0 0
  %921 = vmatpush1.bf16.msra.mxu0 %v781
  %922 = vmatprep.subr.bf16.mxu0 0
  %923 = vmatpush1.bf16.msra.mxu0 %v780
  %924 = vmatprep.subr.bf16.mxu0 0
  %925 = vmatpush2.bf16.msra.mxu0 %v795
  %926 = vmatprep.subr.bf16.mxu0 0
  %927 = vmatpush2.bf16.msra.mxu0 %v794
  %928 = vmatprep.subr.bf16.mxu0 0
  %929 = vmatpush2.bf16.msra.mxu0 %v793
  %930 = vmatprep.subr.bf16.mxu0 0
  %931 = vmatpush2.bf16.msra.mxu0 %v792
  %932 = vmatprep.subr.bf16.mxu0 0
  %933 = vmatpush2.bf16.msra.mxu0 %v791
  %934 = vmatprep.subr.bf16.mxu0 0
  %935 = vmatpush2.bf16.msra.mxu0 %v790
  %936 = vmatprep.subr.bf16.mxu0 0
  %937 = vmatpush2.bf16.msra.mxu0 %v789
  %938 = vmatprep.subr.bf16.mxu0 0
  %939 = vmatpush2.bf16.msra.mxu0 %v788
  %940 = vmatprep.mubr.bf16.mxu0 %v397
  %941 = vmatmul.mubr.bf16.gmra.mxu0 %v396
  %v942 = vpop.f32.mrf.mxu0
  %v943 = vadd.f32 0.0, %v942
  %v944 = vpop.f32.mrf.mxu0
  %v945 = vpop.f32.mrf.mxu0
  %v946 = vadd.f32 0.0, %v945
  %v947 = vpop.f32.mrf.mxu0
  %948 = vmatprep.mubr.bf16.mxu0 %v405
  %949 = vmatmul.mubr.bf16.gmra.mxu0 %v404
  %v950 = vpop.f32.mrf.mxu0
  %v951 = vadd.f32 0.0, %v950
  %v952 = vpop.f32.mrf.mxu0
  %v953 = vpop.f32.mrf.mxu0
  %v954 = vadd.f32 0.0, %v953
  %v955 = vpop.f32.mrf.mxu0
  %956 = vmatprep.mubr.bf16.mxu0 %v413
  %957 = vmatmul.mubr.bf16.gmra.mxu0 %v412
  %v958 = vpop.f32.mrf.mxu0
  %v959 = vadd.f32 0.0, %v958
  %v960 = vpop.f32.mrf.mxu0
  %v961 = vpop.f32.mrf.mxu0
  %v962 = vadd.f32 0.0, %v961
  %v963 = vpop.f32.mrf.mxu0
  %964 = vmatprep.mubr.bf16.mxu0 %v421
  %965 = vmatmul.mubr.bf16.gmra.mxu0 %v420
  %v966 = vpop.f32.mrf.mxu0
  %v967 = vadd.f32 0.0, %v966
  %v968 = vpop.f32.mrf.mxu0
  %v969 = vpop.f32.mrf.mxu0
  %v970 = vadd.f32 0.0, %v969
  %v971 = vpop.f32.mrf.mxu0
  %972 = vmatprep.mubr.bf16.mxu0 %v429
  %973 = vmatmul.mubr.bf16.gmra.mxu0 %v428
  %v974 = vpop.f32.mrf.mxu0
  %v975 = vadd.f32 0.0, %v974
  %v976 = vpop.f32.mrf.mxu0
  %v977 = vpop.f32.mrf.mxu0
  %v978 = vadd.f32 0.0, %v977
  %v979 = vpop.f32.mrf.mxu0
  %980 = vmatprep.mubr.bf16.mxu0 %v437
  %981 = vmatmul.mubr.bf16.gmra.mxu0 %v436
  %v982 = vpop.f32.mrf.mxu0
  %v983 = vadd.f32 0.0, %v982
  %v984 = vpop.f32.mrf.mxu0
  %v985 = vpop.f32.mrf.mxu0
  %v986 = vadd.f32 0.0, %v985
  %v987 = vpop.f32.mrf.mxu0
  %988 = vmatprep.mubr.bf16.mxu0 %v445
  %989 = vmatmul.mubr.bf16.gmra.mxu0 %v444
  %v990 = vpop.f32.mrf.mxu0
  %v991 = vadd.f32 0.0, %v990
  %v992 = vpop.f32.mrf.mxu0
  %v993 = vpop.f32.mrf.mxu0
  %v994 = vadd.f32 0.0, %v993
  %v995 = vpop.f32.mrf.mxu0
  %996 = vmatprep.mubr.bf16.mxu0 %v453
  %997 = vmatmul.mubr.bf16.gmra.mxu0 %v452
  %v998 = vpop.f32.mrf.mxu0
  %v999 = vadd.f32 0.0, %v998
  %v1000 = vpop.f32.mrf.mxu0
  %v1001 = vpop.f32.mrf.mxu0
  %v1002 = vadd.f32 0.0, %v1001
  %v1003 = vpop.f32.mrf.mxu0
  %1004 = vdwg.mxu0
  %1005 = vmatprep.subr.bf16.mxu0 0
  %1006 = vmatpush1.bf16.msra.mxu0 %v803
  %1007 = vmatprep.subr.bf16.mxu0 0
  %1008 = vmatpush1.bf16.msra.mxu0 %v802
  %1009 = vmatprep.subr.bf16.mxu0 0
  %1010 = vmatpush1.bf16.msra.mxu0 %v801
  %1011 = vmatprep.subr.bf16.mxu0 0
  %1012 = vmatpush1.bf16.msra.mxu0 %v800
  %1013 = vmatprep.subr.bf16.mxu0 0
  %1014 = vmatpush1.bf16.msra.mxu0 %v799
  %1015 = vmatprep.subr.bf16.mxu0 0
  %1016 = vmatpush1.bf16.msra.mxu0 %v798
  %1017 = vmatprep.subr.bf16.mxu0 0
  %1018 = vmatpush1.bf16.msra.mxu0 %v797
  %1019 = vmatprep.subr.bf16.mxu0 0
  %1020 = vmatpush1.bf16.msra.mxu0 %v796
  %1021 = vmatprep.subr.bf16.mxu0 0
  %1022 = vmatpush2.bf16.msra.mxu0 %v811
  %1023 = vmatprep.subr.bf16.mxu0 0
  %1024 = vmatpush2.bf16.msra.mxu0 %v810
  %1025 = vmatprep.subr.bf16.mxu0 0
  %1026 = vmatpush2.bf16.msra.mxu0 %v809
  %1027 = vmatprep.subr.bf16.mxu0 0
  %1028 = vmatpush2.bf16.msra.mxu0 %v808
  %1029 = vmatprep.subr.bf16.mxu0 0
  %1030 = vmatpush2.bf16.msra.mxu0 %v807
  %1031 = vmatprep.subr.bf16.mxu0 0
  %1032 = vmatpush2.bf16.msra.mxu0 %v806
  %1033 = vmatprep.subr.bf16.mxu0 0
  %1034 = vmatpush2.bf16.msra.mxu0 %v805
  %1035 = vmatprep.subr.bf16.mxu0 0
  %1036 = vmatpush2.bf16.msra.mxu0 %v804
  %1037 = vmatprep.mubr.bf16.mxu0 %v399
  %1038 = vmatmul.mubr.bf16.gmra.mxu0 %v398
  %v1039 = vpop.f32.mrf.mxu0
  %v1040 = vadd.f32 %v943, %v1039
  %v1041 = vpop.f32.mrf.mxu0
  %v1042 = vpop.f32.mrf.mxu0
  %v1043 = vadd.f32 %v946, %v1042
  %v1044 = vpop.f32.mrf.mxu0
  %1045 = vmatprep.mubr.bf16.mxu0 %v407
  %1046 = vmatmul.mubr.bf16.gmra.mxu0 %v406
  %v1047 = vpop.f32.mrf.mxu0
  %v1048 = vadd.f32 %v951, %v1047
  %v1049 = vpop.f32.mrf.mxu0
  %v1050 = vpop.f32.mrf.mxu0
  %v1051 = vadd.f32 %v954, %v1050
  %v1052 = vpop.f32.mrf.mxu0
  %1053 = vmatprep.mubr.bf16.mxu0 %v415
  %1054 = vmatmul.mubr.bf16.gmra.mxu0 %v414
  %v1055 = vpop.f32.mrf.mxu0
  %v1056 = vadd.f32 %v959, %v1055
  %v1057 = vpop.f32.mrf.mxu0
  %v1058 = vpop.f32.mrf.mxu0
  %v1059 = vadd.f32 %v962, %v1058
  %v1060 = vpop.f32.mrf.mxu0
  %1061 = vmatprep.mubr.bf16.mxu0 %v423
  %1062 = vmatmul.mubr.bf16.gmra.mxu0 %v422
  %v1063 = vpop.f32.mrf.mxu0
  %v1064 = vadd.f32 %v967, %v1063
  %v1065 = vpop.f32.mrf.mxu0
  %v1066 = vpop.f32.mrf.mxu0
  %v1067 = vadd.f32 %v970, %v1066
  %v1068 = vpop.f32.mrf.mxu0
  %1069 = vmatprep.mubr.bf16.mxu0 %v431
  %1070 = vmatmul.mubr.bf16.gmra.mxu0 %v430
  %v1071 = vpop.f32.mrf.mxu0
  %v1072 = vadd.f32 %v975, %v1071
  %v1073 = vpop.f32.mrf.mxu0
  %v1074 = vpop.f32.mrf.mxu0
  %v1075 = vadd.f32 %v978, %v1074
  %v1076 = vpop.f32.mrf.mxu0
  %1077 = vmatprep.mubr.bf16.mxu0 %v439
  %1078 = vmatmul.mubr.bf16.gmra.mxu0 %v438
  %v1079 = vpop.f32.mrf.mxu0
  %v1080 = vadd.f32 %v983, %v1079
  %v1081 = vpop.f32.mrf.mxu0
  %v1082 = vpop.f32.mrf.mxu0
  %v1083 = vadd.f32 %v986, %v1082
  %v1084 = vpop.f32.mrf.mxu0
  %1085 = vmatprep.mubr.bf16.mxu0 %v447
  %1086 = vmatmul.mubr.bf16.gmra.mxu0 %v446
  %v1087 = vpop.f32.mrf.mxu0
  %v1088 = vadd.f32 %v991, %v1087
  %v1089 = vpop.f32.mrf.mxu0
  %v1090 = vpop.f32.mrf.mxu0
  %v1091 = vadd.f32 %v994, %v1090
  %v1092 = vpop.f32.mrf.mxu0
  %1093 = vmatprep.mubr.bf16.mxu0 %v455
  %1094 = vmatmul.mubr.bf16.gmra.mxu0 %v454
  %v1095 = vpop.f32.mrf.mxu0
  %v1096 = vadd.f32 %v999, %v1095
  %v1097 = vpop.f32.mrf.mxu0
  %v1098 = vpop.f32.mrf.mxu0
  %v1099 = vadd.f32 %v1002, %v1098
  %v1100 = vpop.f32.mrf.mxu0
  %1101 = vdwg.mxu0
  %1102 = vmatprep.subr.bf16.mxu0 0
  %1103 = vmatpush1.bf16.msra.mxu0 %v819
  %1104 = vmatprep.subr.bf16.mxu0 0
  %1105 = vmatpush1.bf16.msra.mxu0 %v818
  %1106 = vmatprep.subr.bf16.mxu0 0
  %1107 = vmatpush1.bf16.msra.mxu0 %v817
  %1108 = vmatprep.subr.bf16.mxu0 0
  %1109 = vmatpush1.bf16.msra.mxu0 %v816
  %1110 = vmatprep.subr.bf16.mxu0 0
  %1111 = vmatpush1.bf16.msra.mxu0 %v815
  %1112 = vmatprep.subr.bf16.mxu0 0
  %1113 = vmatpush1.bf16.msra.mxu0 %v814
  %1114 = vmatprep.subr.bf16.mxu0 0
  %1115 = vmatpush1.bf16.msra.mxu0 %v813
  %1116 = vmatprep.subr.bf16.mxu0 0
  %1117 = vmatpush1.bf16.msra.mxu0 %v812
  %1118 = vmatprep.subr.bf16.mxu0 0
  %1119 = vmatpush2.bf16.msra.mxu0 %v827
  %1120 = vmatprep.subr.bf16.mxu0 0
  %1121 = vmatpush2.bf16.msra.mxu0 %v826
  %1122 = vmatprep.subr.bf16.mxu0 0
  %1123 = vmatpush2.bf16.msra.mxu0 %v825
  %1124 = vmatprep.subr.bf16.mxu0 0
  %1125 = vmatpush2.bf16.msra.mxu0 %v824
  %1126 = vmatprep.subr.bf16.mxu0 0
  %1127 = vmatpush2.bf16.msra.mxu0 %v823
  %1128 = vmatprep.subr.bf16.mxu0 0
  %1129 = vmatpush2.bf16.msra.mxu0 %v822
  %1130 = vmatprep.subr.bf16.mxu0 0
  %1131 = vmatpush2.bf16.msra.mxu0 %v821
  %1132 = vmatprep.subr.bf16.mxu0 0
  %1133 = vmatpush2.bf16.msra.mxu0 %v820
  %1134 = vmatprep.mubr.bf16.mxu0 %v401
  %1135 = vmatmul.mubr.bf16.gmra.mxu0 %v400
  %v1136 = vpop.f32.mrf.mxu0
  %v1137 = vadd.f32 %v1040, %v1136
  %v1138 = vpop.f32.mrf.mxu0
  %v1139 = vpop.f32.mrf.mxu0
  %v1140 = vadd.f32 %v1043, %v1139
  %v1141 = vpop.f32.mrf.mxu0
  %1142 = vmatprep.mubr.bf16.mxu0 %v409
  %1143 = vmatmul.mubr.bf16.gmra.mxu0 %v408
  %v1144 = vpop.f32.mrf.mxu0
  %v1145 = vadd.f32 %v1048, %v1144
  %v1146 = vpop.f32.mrf.mxu0
  %v1147 = vpop.f32.mrf.mxu0
  %v1148 = vadd.f32 %v1051, %v1147
  %v1149 = vpop.f32.mrf.mxu0
  %1150 = vmatprep.mubr.bf16.mxu0 %v417
  %1151 = vmatmul.mubr.bf16.gmra.mxu0 %v416
  %v1152 = vpop.f32.mrf.mxu0
  %v1153 = vadd.f32 %v1056, %v1152
  %v1154 = vpop.f32.mrf.mxu0
  %v1155 = vpop.f32.mrf.mxu0
  %v1156 = vadd.f32 %v1059, %v1155
  %v1157 = vpop.f32.mrf.mxu0
  %1158 = vmatprep.mubr.bf16.mxu0 %v425
  %1159 = vmatmul.mubr.bf16.gmra.mxu0 %v424
  %v1160 = vpop.f32.mrf.mxu0
  %v1161 = vadd.f32 %v1064, %v1160
  %v1162 = vpop.f32.mrf.mxu0
  %v1163 = vpop.f32.mrf.mxu0
  %v1164 = vadd.f32 %v1067, %v1163
  %v1165 = vpop.f32.mrf.mxu0
  %1166 = vmatprep.mubr.bf16.mxu0 %v433
  %1167 = vmatmul.mubr.bf16.gmra.mxu0 %v432
  %v1168 = vpop.f32.mrf.mxu0
  %v1169 = vadd.f32 %v1072, %v1168
  %v1170 = vpop.f32.mrf.mxu0
  %v1171 = vpop.f32.mrf.mxu0
  %v1172 = vadd.f32 %v1075, %v1171
  %v1173 = vpop.f32.mrf.mxu0
  %1174 = vmatprep.mubr.bf16.mxu0 %v441
  %1175 = vmatmul.mubr.bf16.gmra.mxu0 %v440
  %v1176 = vpop.f32.mrf.mxu0
  %v1177 = vadd.f32 %v1080, %v1176
  %v1178 = vpop.f32.mrf.mxu0
  %v1179 = vpop.f32.mrf.mxu0
  %v1180 = vadd.f32 %v1083, %v1179
  %v1181 = vpop.f32.mrf.mxu0
  %1182 = vmatprep.mubr.bf16.mxu0 %v449
  %1183 = vmatmul.mubr.bf16.gmra.mxu0 %v448
  %v1184 = vpop.f32.mrf.mxu0
  %v1185 = vadd.f32 %v1088, %v1184
  %v1186 = vpop.f32.mrf.mxu0
  %v1187 = vpop.f32.mrf.mxu0
  %v1188 = vadd.f32 %v1091, %v1187
  %v1189 = vpop.f32.mrf.mxu0
  %1190 = vmatprep.mubr.bf16.mxu0 %v457
  %1191 = vmatmul.mubr.bf16.gmra.mxu0 %v456
  %v1192 = vpop.f32.mrf.mxu0
  %v1193 = vadd.f32 %v1096, %v1192
  %v1194 = vpop.f32.mrf.mxu0
  %v1195 = vpop.f32.mrf.mxu0
  %v1196 = vadd.f32 %v1099, %v1195
  %v1197 = vpop.f32.mrf.mxu0
  %1198 = vdwg.mxu0
  %1199 = vmatprep.subr.bf16.mxu0 0
  %1200 = vmatpush1.bf16.msra.mxu0 %v835
  %1201 = vmatprep.subr.bf16.mxu0 0
  %1202 = vmatpush1.bf16.msra.mxu0 %v834
  %1203 = vmatprep.subr.bf16.mxu0 0
  %1204 = vmatpush1.bf16.msra.mxu0 %v833
  %1205 = vmatprep.subr.bf16.mxu0 0
  %1206 = vmatpush1.bf16.msra.mxu0 %v832
  %1207 = vmatprep.subr.bf16.mxu0 0
  %1208 = vmatpush1.bf16.msra.mxu0 %v831
  %1209 = vmatprep.subr.bf16.mxu0 0
  %1210 = vmatpush1.bf16.msra.mxu0 %v830
  %1211 = vmatprep.subr.bf16.mxu0 0
  %1212 = vmatpush1.bf16.msra.mxu0 %v829
  %1213 = vmatprep.subr.bf16.mxu0 0
  %1214 = vmatpush1.bf16.msra.mxu0 %v828
  %1215 = vmatprep.subr.bf16.mxu0 0
  %1216 = vmatpush2.bf16.msra.mxu0 %v843
  %1217 = vmatprep.subr.bf16.mxu0 0
  %1218 = vmatpush2.bf16.msra.mxu0 %v842
  %1219 = vmatprep.subr.bf16.mxu0 0
  %1220 = vmatpush2.bf16.msra.mxu0 %v841
  %1221 = vmatprep.subr.bf16.mxu0 0
  %1222 = vmatpush2.bf16.msra.mxu0 %v840
  %1223 = vmatprep.subr.bf16.mxu0 0
  %1224 = vmatpush2.bf16.msra.mxu0 %v839
  %1225 = vmatprep.subr.bf16.mxu0 0
  %1226 = vmatpush2.bf16.msra.mxu0 %v838
  %1227 = vmatprep.subr.bf16.mxu0 0
  %1228 = vmatpush2.bf16.msra.mxu0 %v837
  %1229 = vmatprep.subr.bf16.mxu0 0
  %1230 = vmatpush2.bf16.msra.mxu0 %v836
  %1231 = vmatprep.mubr.bf16.mxu0 %v403
  %1232 = vmatmul.mubr.bf16.gmra.mxu0 %v402
  %v1233 = vpop.f32.mrf.mxu0
  %v1234 = vadd.f32 %v1137, %v1233
  %v1235 = vpop.f32.mrf.mxu0
  %v1236 = vpop.f32.mrf.mxu0
  %v1237 = vadd.f32 %v1140, %v1236
  %v1238 = vpop.f32.mrf.mxu0
  %1239 = vmatprep.mubr.bf16.mxu0 %v411
  %1240 = vmatmul.mubr.bf16.gmra.mxu0 %v410
  %v1241 = vpop.f32.mrf.mxu0
  %v1242 = vadd.f32 %v1145, %v1241
  %v1243 = vpop.f32.mrf.mxu0
  %v1244 = vpop.f32.mrf.mxu0
  %v1245 = vadd.f32 %v1148, %v1244
  %v1246 = vpop.f32.mrf.mxu0
  %1247 = vmatprep.mubr.bf16.mxu0 %v419
  %1248 = vmatmul.mubr.bf16.gmra.mxu0 %v418
  %v1249 = vpop.f32.mrf.mxu0
  %v1250 = vadd.f32 %v1153, %v1249
  %v1251 = vpop.f32.mrf.mxu0
  %v1252 = vpop.f32.mrf.mxu0
  %v1253 = vadd.f32 %v1156, %v1252
  %v1254 = vpop.f32.mrf.mxu0
  %1255 = vmatprep.mubr.bf16.mxu0 %v427
  %1256 = vmatmul.mubr.bf16.gmra.mxu0 %v426
  %v1257 = vpop.f32.mrf.mxu0
  %v1258 = vadd.f32 %v1161, %v1257
  %v1259 = vpop.f32.mrf.mxu0
  %v1260 = vpop.f32.mrf.mxu0
  %v1261 = vadd.f32 %v1164, %v1260
  %v1262 = vpop.f32.mrf.mxu0
  %1263 = vmatprep.mubr.bf16.mxu0 %v435
  %1264 = vmatmul.mubr.bf16.gmra.mxu0 %v434
  %v1265 = vpop.f32.mrf.mxu0
  %v1266 = vadd.f32 %v1169, %v1265
  %v1267 = vpop.f32.mrf.mxu0
  %v1268 = vpop.f32.mrf.mxu0
  %v1269 = vadd.f32 %v1172, %v1268
  %v1270 = vpop.f32.mrf.mxu0
  %1271 = vmatprep.mubr.bf16.mxu0 %v443
  %1272 = vmatmul.mubr.bf16.gmra.mxu0 %v442
  %v1273 = vpop.f32.mrf.mxu0
  %v1274 = vadd.f32 %v1177, %v1273
  %v1275 = vpop.f32.mrf.mxu0
  %v1276 = vpop.f32.mrf.mxu0
  %v1277 = vadd.f32 %v1180, %v1276
  %v1278 = vpop.f32.mrf.mxu0
  %1279 = vmatprep.mubr.bf16.mxu0 %v451
  %1280 = vmatmul.mubr.bf16.gmra.mxu0 %v450
  %v1281 = vpop.f32.mrf.mxu0
  %v1282 = vadd.f32 %v1185, %v1281
  %v1283 = vpop.f32.mrf.mxu0
  %v1284 = vpop.f32.mrf.mxu0
  %v1285 = vadd.f32 %v1188, %v1284
  %v1286 = vpop.f32.mrf.mxu0
  %1287 = vmatprep.mubr.bf16.mxu0 %v459
  %1288 = vmatmul.mubr.bf16.gmra.mxu0 %v458
  %v1289 = vpop.f32.mrf.mxu0
  %v1290 = vadd.f32 %v1193, %v1289
  %v1291 = vpop.f32.mrf.mxu0
  %v1292 = vpop.f32.mrf.mxu0
  %v1293 = vadd.f32 %v1196, %v1292
  %v1294 = vpop.f32.mrf.mxu0
  %1295 = vdwg.mxu0
  %v1296 = vxor.u32 %v1234, 2147483648
  %v1297 = vxor.u32 %v1237, 2147483648
  %v1298 = vxor.u32 %v1242, 2147483648
  %v1299 = vxor.u32 %v1245, 2147483648
  %v1300 = vxor.u32 %v1250, 2147483648
  %v1301 = vxor.u32 %v1253, 2147483648
  %v1302 = vxor.u32 %v1258, 2147483648
  %v1303 = vxor.u32 %v1261, 2147483648
  %v1304 = vxor.u32 %v1266, 2147483648
  %v1305 = vxor.u32 %v1269, 2147483648
  %v1306 = vxor.u32 %v1274, 2147483648
  %v1307 = vxor.u32 %v1277, 2147483648
  %v1308 = vxor.u32 %v1282, 2147483648
  %v1309 = vxor.u32 %v1285, 2147483648
  %v1310 = vxor.u32 %v1290, 2147483648
  %v1311 = vxor.u32 %v1293, 2147483648
  %v1312 = vmul.f32 %v1296, 1.442695
  %v1313 = vpow.pop %v1312
  %v1314 = vmul.f32 %v1297, 1.442695
  %v1315 = vpow.pop %v1314
  %v1316 = vmul.f32 %v1298, 1.442695
  %v1317 = vpow.pop %v1316
  %v1318 = vmul.f32 %v1299, 1.442695
  %v1319 = vpow.pop %v1318
  %v1320 = vmul.f32 %v1300, 1.442695
  %v1321 = vpow.pop %v1320
  %v1322 = vmul.f32 %v1301, 1.442695
  %v1323 = vpow.pop %v1322
  %v1324 = vmul.f32 %v1302, 1.442695
  %v1325 = vpow.pop %v1324
  %v1326 = vmul.f32 %v1303, 1.442695
  %v1327 = vpow.pop %v1326
  %v1328 = vmul.f32 %v1304, 1.442695
  %v1329 = vpow.pop %v1328
  %v1330 = vmul.f32 %v1305, 1.442695
  %v1331 = vpow.pop %v1330
  %v1332 = vmul.f32 %v1306, 1.442695
  %v1333 = vpow.pop %v1332
  %v1334 = vmul.f32 %v1307, 1.442695
  %v1335 = vpow.pop %v1334
  %v1336 = vmul.f32 %v1308, 1.442695
  %v1337 = vpow.pop %v1336
  %v1338 = vmul.f32 %v1309, 1.442695
  %v1339 = vpow.pop %v1338
  %v1340 = vmul.f32 %v1310, 1.442695
  %v1341 = vpow.pop %v1340
  %v1342 = vmul.f32 %v1311, 1.442695
  %v1343 = vpow.pop %v1342
  %v1344 = vadd.f32 %v1313, 1.0
  %v1345 = vadd.f32 %v1315, 1.0
  %v1346 = vadd.f32 %v1317, 1.0
  %v1347 = vadd.f32 %v1319, 1.0
  %v1348 = vadd.f32 %v1321, 1.0
  %v1349 = vadd.f32 %v1323, 1.0
  %v1350 = vadd.f32 %v1325, 1.0
  %v1351 = vadd.f32 %v1327, 1.0
  %v1352 = vadd.f32 %v1329, 1.0
  %v1353 = vadd.f32 %v1331, 1.0
  %v1354 = vadd.f32 %v1333, 1.0
  %v1355 = vadd.f32 %v1335, 1.0
  %v1356 = vadd.f32 %v1337, 1.0
  %v1357 = vadd.f32 %v1339, 1.0
  %v1358 = vadd.f32 %v1341, 1.0
  %v1359 = vadd.f32 %v1343, 1.0
  %v1360 = vrcp.pop %v1344
  %v1361 = vmul.f32 1.0, %v1360
  %v1362 = vrcp.pop %v1345
  %v1363 = vmul.f32 1.0, %v1362
  %v1364 = vrcp.pop %v1346
  %v1365 = vmul.f32 1.0, %v1364
  %v1366 = vrcp.pop %v1347
  %v1367 = vmul.f32 1.0, %v1366
  %v1368 = vrcp.pop %v1348
  %v1369 = vmul.f32 1.0, %v1368
  %v1370 = vrcp.pop %v1349
  %v1371 = vmul.f32 1.0, %v1370
  %v1372 = vrcp.pop %v1350
  %v1373 = vmul.f32 1.0, %v1372
  %v1374 = vrcp.pop %v1351
  %v1375 = vmul.f32 1.0, %v1374
  %v1376 = vrcp.pop %v1352
  %v1377 = vmul.f32 1.0, %v1376
  %v1378 = vrcp.pop %v1353
  %v1379 = vmul.f32 1.0, %v1378
  %v1380 = vrcp.pop %v1354
  %v1381 = vmul.f32 1.0, %v1380
  %v1382 = vrcp.pop %v1355
  %v1383 = vmul.f32 1.0, %v1382
  %v1384 = vrcp.pop %v1356
  %v1385 = vmul.f32 1.0, %v1384
  %v1386 = vrcp.pop %v1357
  %v1387 = vmul.f32 1.0, %v1386
  %v1388 = vrcp.pop %v1358
  %v1389 = vmul.f32 1.0, %v1388
  %v1390 = vrcp.pop %v1359
  %v1391 = vmul.f32 1.0, %v1390
  %vm1392 = vcmask 15360
  %1393 = vst.msk [vmem:[%s2] sm:$0xff] %vm1392, %v1361
  %1394 = vst.msk [vmem:[%s2 + $0x8] sm:$0xff] %vm1392, %v1363
  %1395 = vst.msk [vmem:[%s2 + $0x10] sm:$0xff] %vm1392, %v1365
  %1396 = vst.msk [vmem:[%s2 + $0x18] sm:$0xff] %vm1392, %v1367
  %1397 = vst.msk [vmem:[%s2 + $0x20] sm:$0xff] %vm1392, %v1369
  %1398 = vst.msk [vmem:[%s2 + $0x28] sm:$0xff] %vm1392, %v1371
  %1399 = vst.msk [vmem:[%s2 + $0x30] sm:$0xff] %vm1392, %v1373
  %1400 = vst.msk [vmem:[%s2 + $0x38] sm:$0xff] %vm1392, %v1375
  %1401 = vst.msk [vmem:[%s2 + $0x40] sm:$0xff] %vm1392, %v1377
  %1402 = vst.msk [vmem:[%s2 + $0x48] sm:$0xff] %vm1392, %v1379
  %1403 = vst.msk [vmem:[%s2 + $0x50] sm:$0xff] %vm1392, %v1381
  %1404 = vst.msk [vmem:[%s2 + $0x58] sm:$0xff] %vm1392, %v1383
  %1405 = vst.msk [vmem:[%s2 + $0x60] sm:$0xff] %vm1392, %v1385
  %1406 = vst.msk [vmem:[%s2 + $0x68] sm:$0xff] %vm1392, %v1387
  %1407 = vst.msk [vmem:[%s2 + $0x70] sm:$0xff] %vm1392, %v1389
  %1408 = vst.msk [vmem:[%s2 + $0x78] sm:$0xff] %vm1392, %v1391
  // Predicated region
  $region10: #{discriminator_forward.7} parent=0 // pred_check
    _
  $region11: #{discriminator_forward.7} parent=0 // pred_check_branch
    %1410 = sbr.rel (0) target = $region13
  $region12: #{discriminator_forward.7} parent=0 // pred_region
    _
  $region13: #{discriminator_forward.7} parent=0 // pred_fallthru
    _
  // Predicated region
  $region14: #{discriminator_forward.7} parent=0 // pred_check
    _
  $region15: #{discriminator_forward.7} parent=0 // pred_check_branch
    %1412 = sbr.rel (0) target = $region17
  $region16: #{discriminator_forward.7} parent=0 // pred_region
    _
  $region17: #{discriminator_forward.7} parent=0 // pred_fallthru
    _

</llo_original>
